<compile_context>
chip_gen: v7x
topology: tpu7x:2x2x1
jax: 0.10.0
libtpu: 0.0.40
codegen_flags: <defaults>
</compile_context>

<pallas_src>
import functools
import math

import jax
import jax.numpy as jnp
from jax.experimental import pallas as pl
from jax.experimental.pallas import tpu as pltpu  # noqa: F401  (TPU backend)


LANE = 128


def _round_up(n, m):
    return ((n + m - 1) // m) * m


# ----------------------------- fused Pallas kernel ---------------------------

def _fused_lstm_fc_kernel(*refs, hidden_size, num_layers, seq_len):
    """Fused multi-layer LSTM + fc head, everything resident in VMEM.

    refs layout (all f32):
      refs[0]                       : x        (T, D_in)
      per layer l (3 refs each)     : w_ih_t   (D_in_l, 4H)
                                      w_hh_t   (H, 4H)
                                      b        (1, 4H)      = b_ih + b_hh
      then fc head                  : w1_t     (H, MID_PAD)  zero-padded
                                      b1       (1, MID_PAD)  zero-padded
                                      w2_t     (MID_PAD, OUT_PAD) zero-padded
                                      b2       (1, OUT_PAD)  zero-padded
      last                          : out_ref  (T, OUT_PAD)
    Gate order follows PyTorch: [i, f, g, o].
    """
    H = hidden_size
    T = seq_len
    n_lstm = 3 * num_layers

    x_ref = refs[0]
    lstm_refs = refs[1:1 + n_lstm]
    w1_ref, b1_ref, w2_ref, b2_ref = refs[1 + n_lstm:1 + n_lstm + 4]
    out_ref = refs[1 + n_lstm + 4]

    layer_in = x_ref[...]                                          # (T, D_in)

    for layer in range(num_layers):
        w_ih_ref = lstm_refs[3 * layer]
        w_hh_ref = lstm_refs[3 * layer + 1]
        b_ref = lstm_refs[3 * layer + 2]

        # Hoisted input projection (+ bias) for ALL timesteps: one MXU matmul
        # off the serial critical path.
        x_proj = (
            jnp.dot(layer_in, w_ih_ref[...], preferred_element_type=jnp.float32)
            + b_ref[...]
        )                                                          # (T, 4H)

        w_hh = w_hh_ref[...]                                       # (H, 4H)
        h = jnp.zeros((1, H), jnp.float32)
        c = jnp.zeros((1, H), jnp.float32)
        hs = []
        # Fully unrolled recurrence (T static & small): only h @ w_hh remains
        # on the serial path; sigmoid/tanh go to the EUP.
        for t in range(T):
            gates = x_proj[t:t + 1, :] + jnp.dot(
                h, w_hh, preferred_element_type=jnp.float32)       # (1, 4H)
            i_g = jax.nn.sigmoid(gates[:, 0:H])
            f_g = jax.nn.sigmoid(gates[:, H:2 * H])
            g_g = jnp.tanh(gates[:, 2 * H:3 * H])
            o_g = jax.nn.sigmoid(gates[:, 3 * H:4 * H])
            c = f_g * c + i_g * g_g
            h = o_g * jnp.tanh(c)
            hs.append(h)
        layer_in = jnp.concatenate(hs, axis=0)                     # (T, H)

    # fc head: Linear(H, H/4) -> Dropout(eval: identity) -> Linear(H/4, out)
    # Weights are pre-padded to lane-dense widths; padded lanes are all zero,
    # so they contribute nothing and the wrapper slices them away.
    h1 = (
        jnp.dot(layer_in, w1_ref[...], preferred_element_type=jnp.float32)
        + b1_ref[...]
    )                                                              # (T, MID_PAD)
    out_ref[...] = (
        jnp.dot(h1, w2_ref[...], preferred_element_type=jnp.float32)
        + b2_ref[...]
    )                                                              # (T, OUT_PAD)


# --------------------------------- wrappers -----------------------------------

def prepare_params(params, hidden_size, num_layers, output_size):
    """One-time weight prep: transpose, merge biases, zero-pad the fc head."""
    mid = hidden_size // 4
    mid_pad = _round_up(mid, LANE)
    out_pad = _round_up(output_size, LANE)

    flat = []
    for layer in range(num_layers):
        p = params["lstm"][layer]
        flat.append(jnp.asarray(p["w_ih"], jnp.float32).T)         # (D_in, 4H)
        flat.append(jnp.asarray(p["w_hh"], jnp.float32).T)         # (H, 4H)
        flat.append(
            (jnp.asarray(p["b_ih"], jnp.float32)
             + jnp.asarray(p["b_hh"], jnp.float32)).reshape(1, -1)  # (1, 4H)
        )

    fc = params["fc"]
    w1_t = jnp.asarray(fc["w1"], jnp.float32).T                    # (H, mid)
    b1 = jnp.asarray(fc["b1"], jnp.float32).reshape(1, -1)         # (1, mid)
    w2_t = jnp.asarray(fc["w2"], jnp.float32).T                    # (mid, out)
    b2 = jnp.asarray(fc["b2"], jnp.float32).reshape(1, -1)         # (1, out)

    w1_p = jnp.zeros((hidden_size, mid_pad), jnp.float32).at[:, :mid].set(w1_t)
    b1_p = jnp.zeros((1, mid_pad), jnp.float32).at[:, :mid].set(b1)
    w2_p = jnp.zeros((mid_pad, out_pad), jnp.float32).at[:mid, :output_size].set(w2_t)
    b2_p = jnp.zeros((1, out_pad), jnp.float32).at[:, :output_size].set(b2)

    flat += [w1_p, b1_p, w2_p, b2_p]
    return tuple(flat)


@functools.partial(jax.jit, static_argnames=("hidden_size", "num_layers", "output_size"))
def lstm_model_forward(x, flat_params, *, hidden_size, num_layers, output_size):
    """Full forward pass (h0 = c0 = 0, matching the PyTorch module's forward)."""
    T = x.shape[0]
    out_pad = _round_up(output_size, LANE)
    kernel = functools.partial(
        _fused_lstm_fc_kernel,
        hidden_size=hidden_size,
        num_layers=num_layers,
        seq_len=T,
    )
    out_padded = pl.pallas_call(
        kernel,
        out_shape=jax.ShapeDtypeStruct((T, out_pad), jnp.float32),
    )(jnp.asarray(x, jnp.float32), *flat_params)
    return out_padded[:, :output_size]


# --------------------------- deterministic params ---------------------------

def init_params(key, input_size, hidden_size, num_layers, output_size):
    params = {"lstm": [], "fc": {}}
    k = 1.0 / math.sqrt(hidden_size)
    for layer in range(num_layers):
        d_in = input_size if layer == 0 else hidden_size
        key, k1, k2, k3, k4 = jax.random.split(key, 5)
        params["lstm"].append({
            "w_ih": jax.random.uniform(k1, (4 * hidden_size, d_in), jnp.float32, -k, k),
            "w_hh": jax.random.uniform(k2, (4 * hidden_size, hidden_size), jnp.float32, -k, k),
            "b_ih": jax.random.uniform(k3, (4 * hidden_size,), jnp.float32, -k, k),
            "b_hh": jax.random.uniform(k4, (4 * hidden_size,), jnp.float32, -k, k),
        })
    mid = hidden_size // 4
    key, k1, k2, k3, k4 = jax.random.split(key, 5)
    b1 = 1.0 / math.sqrt(hidden_size)
    b2 = 1.0 / math.sqrt(mid)
    params["fc"] = {
        "w1": jax.random.uniform(k1, (mid, hidden_size), jnp.float32, -b1, b1),
        "b1": jax.random.uniform(k2, (mid,), jnp.float32, -b1, b1),
        "w2": jax.random.uniform(k3, (output_size, mid), jnp.float32, -b2, b2),
        "b2": jax.random.uniform(k4, (output_size,), jnp.float32, -b2, b2),
    }
    return params


# ---------------------------------- main -------------------------------------

if __name__ == "__main__":
    input_size = 16
    hidden_size = 32
    num_layers = 2
    output_size = 4
    seq_len = 8

    key = jax.random.PRNGKey(0)
    key, pkey, xkey = jax.random.split(key, 3)
    params = init_params(pkey, input_size, hidden_size, num_layers, output_size)
    flat_params = prepare_params(params, hidden_size, num_layers, output_size)

    # unbatched input (seq_len, input_size) — see layout note at top.
    x = jax.random.normal(xkey, (seq_len, input_size), jnp.float32)

    out = lstm_model_forward(
        x, flat_params,
        hidden_size=hidden_size, num_layers=num_layers, output_size=output_size,
    )
    out = jax.block_until_ready(out)
    assert out.shape == (seq_len, output_size), out.shape
    assert out.dtype == jnp.float32
    print("KERNEL_OK")
</pallas_src>

<mosaic_0001>
module attributes {stable_mosaic.version = 11 : i64} {
  func.func @_fused_lstm_fc_kernel(%arg0: memref<8x16xf32, #tpu.memory_space<vmem>>, %arg1: memref<16x128xf32, #tpu.memory_space<vmem>>, %arg2: memref<32x128xf32, #tpu.memory_space<vmem>>, %arg3: memref<1x128xf32, #tpu.memory_space<vmem>>, %arg4: memref<32x128xf32, #tpu.memory_space<vmem>>, %arg5: memref<32x128xf32, #tpu.memory_space<vmem>>, %arg6: memref<1x128xf32, #tpu.memory_space<vmem>>, %arg7: memref<32x128xf32, #tpu.memory_space<vmem>>, %arg8: memref<1x128xf32, #tpu.memory_space<vmem>>, %arg9: memref<128x128xf32, #tpu.memory_space<vmem>>, %arg10: memref<1x128xf32, #tpu.memory_space<vmem>>, %arg11: memref<8x128xf32, #tpu.memory_space<vmem>>) attributes {dimension_semantics = [], scalar_prefetch = 0 : i64, scratch_operands = 0 : i64, tpu.core_type = #tpu.core_type<tc>} {
    %c0 = arith.constant 0 : index
    %c0_0 = arith.constant 0 : index
    %0 = vector.load %arg0[%c0, %c0_0] : memref<8x16xf32, #tpu.memory_space<vmem>>, vector<8x16xf32>
    %c0_1 = arith.constant 0 : index
    %c0_2 = arith.constant 0 : index
    %1 = vector.load %arg1[%c0_1, %c0_2] : memref<16x128xf32, #tpu.memory_space<vmem>>, vector<16x128xf32>
    %cst = arith.constant dense<0.000000e+00> : vector<8x128xf32>
    %2 = tpu.matmul %0, %1, %cst {dimension_numbers = #tpu.dot_dimension_numbers<[1], [0], [0], [1], [0, 0, 1, 1], [], []>} : vector<8x16xf32>, vector<16x128xf32>, vector<8x128xf32> -> vector<8x128xf32>
    %c0_3 = arith.constant 0 : index
    %c0_4 = arith.constant 0 : index
    %3 = vector.load %arg3[%c0_3, %c0_4] : memref<1x128xf32, #tpu.memory_space<vmem>>, vector<1x128xf32>
    %4 = vector.broadcast %3 : vector<1x128xf32> to vector<8x128xf32>
    %5 = arith.addf %2, %4 : vector<8x128xf32>
    %c0_5 = arith.constant 0 : index
    %c0_6 = arith.constant 0 : index
    %6 = vector.load %arg2[%c0_5, %c0_6] : memref<32x128xf32, #tpu.memory_space<vmem>>, vector<32x128xf32>
    %cst_7 = arith.constant 0.000000e+00 : f32
    %7 = vector.broadcast %cst_7 : f32 to vector<1x32xf32>
    %cst_8 = arith.constant 0.000000e+00 : f32
    %8 = vector.broadcast %cst_8 : f32 to vector<1x32xf32>
    %9 = vector.extract_strided_slice %5 {offsets = [0, 0], sizes = [1, 128], strides = [1, 1]} : vector<8x128xf32> to vector<1x128xf32>
    %cst_9 = arith.constant dense<0.000000e+00> : vector<1x128xf32>
    %10 = tpu.matmul %7, %6, %cst_9 {dimension_numbers = #tpu.dot_dimension_numbers<[1], [0], [0], [1], [0, 0, 1, 1], [], []>} : vector<1x32xf32>, vector<32x128xf32>, vector<1x128xf32> -> vector<1x128xf32>
    %11 = arith.addf %9, %10 : vector<1x128xf32>
    %12 = vector.extract_strided_slice %11 {offsets = [0, 0], sizes = [1, 32], strides = [1, 1]} : vector<1x128xf32> to vector<1x32xf32>
    %13 = arith.negf %12 : vector<1x32xf32>
    %14 = math.exp %13 : vector<1x32xf32>
    %cst_10 = arith.constant 1.000000e+00 : f32
    %15 = vector.broadcast %cst_10 : f32 to vector<1x32xf32>
    %16 = arith.addf %15, %14 : vector<1x32xf32>
    %17 = arith.divf %15, %16 : vector<1x32xf32>
    %18 = vector.extract_strided_slice %11 {offsets = [0, 32], sizes = [1, 32], strides = [1, 1]} : vector<1x128xf32> to vector<1x32xf32>
    %19 = arith.negf %18 : vector<1x32xf32>
    %20 = math.exp %19 : vector<1x32xf32>
    %cst_11 = arith.constant 1.000000e+00 : f32
    %21 = vector.broadcast %cst_11 : f32 to vector<1x32xf32>
    %22 = arith.addf %21, %20 : vector<1x32xf32>
    %23 = arith.divf %21, %22 : vector<1x32xf32>
    %24 = vector.extract_strided_slice %11 {offsets = [0, 64], sizes = [1, 32], strides = [1, 1]} : vector<1x128xf32> to vector<1x32xf32>
    %25 = math.tanh %24 : vector<1x32xf32>
    %26 = vector.extract_strided_slice %11 {offsets = [0, 96], sizes = [1, 32], strides = [1, 1]} : vector<1x128xf32> to vector<1x32xf32>
    %27 = arith.negf %26 : vector<1x32xf32>
    %28 = math.exp %27 : vector<1x32xf32>
    %cst_12 = arith.constant 1.000000e+00 : f32
    %29 = vector.broadcast %cst_12 : f32 to vector<1x32xf32>
    %30 = arith.addf %29, %28 : vector<1x32xf32>
    %31 = arith.divf %29, %30 : vector<1x32xf32>
    %32 = arith.mulf %23, %8 : vector<1x32xf32>
    %33 = arith.mulf %17, %25 : vector<1x32xf32>
    %34 = arith.addf %32, %33 : vector<1x32xf32>
    %35 = math.tanh %34 : vector<1x32xf32>
    %36 = arith.mulf %31, %35 : vector<1x32xf32>
    %37 = vector.extract_strided_slice %5 {offsets = [1, 0], sizes = [1, 128], strides = [1, 1]} : vector<8x128xf32> to vector<1x128xf32>
    %cst_13 = arith.constant dense<0.000000e+00> : vector<1x128xf32>
    %38 = tpu.matmul %36, %6, %cst_13 {dimension_numbers = #tpu.dot_dimension_numbers<[1], [0], [0], [1], [0, 0, 1, 1], [], []>} : vector<1x32xf32>, vector<32x128xf32>, vector<1x128xf32> -> vector<1x128xf32>
    %39 = arith.addf %37, %38 : vector<1x128xf32>
    %40 = vector.extract_strided_slice %39 {offsets = [0, 0], sizes = [1, 32], strides = [1, 1]} : vector<1x128xf32> to vector<1x32xf32>
    %41 = arith.negf %40 : vector<1x32xf32>
    %42 = math.exp %41 : vector<1x32xf32>
    %cst_14 = arith.constant 1.000000e+00 : f32
    %43 = vector.broadcast %cst_14 : f32 to vector<1x32xf32>
    %44 = arith.addf %43, %42 : vector<1x32xf32>
    %45 = arith.divf %43, %44 : vector<1x32xf32>
    %46 = vector.extract_strided_slice %39 {offsets = [0, 32], sizes = [1, 32], strides = [1, 1]} : vector<1x128xf32> to vector<1x32xf32>
    %47 = arith.negf %46 : vector<1x32xf32>
    %48 = math.exp %47 : vector<1x32xf32>
    %cst_15 = arith.constant 1.000000e+00 : f32
    %49 = vector.broadcast %cst_15 : f32 to vector<1x32xf32>
    %50 = arith.addf %49, %48 : vector<1x32xf32>
    %51 = arith.divf %49, %50 : vector<1x32xf32>
    %52 = vector.extract_strided_slice %39 {offsets = [0, 64], sizes = [1, 32], strides = [1, 1]} : vector<1x128xf32> to vector<1x32xf32>
    %53 = math.tanh %52 : vector<1x32xf32>
    %54 = vector.extract_strided_slice %39 {offsets = [0, 96], sizes = [1, 32], strides = [1, 1]} : vector<1x128xf32> to vector<1x32xf32>
    %55 = arith.negf %54 : vector<1x32xf32>
    %56 = math.exp %55 : vector<1x32xf32>
    %cst_16 = arith.constant 1.000000e+00 : f32
    %57 = vector.broadcast %cst_16 : f32 to vector<1x32xf32>
    %58 = arith.addf %57, %56 : vector<1x32xf32>
    %59 = arith.divf %57, %58 : vector<1x32xf32>
    %60 = arith.mulf %51, %34 : vector<1x32xf32>
    %61 = arith.mulf %45, %53 : vector<1x32xf32>
    %62 = arith.addf %60, %61 : vector<1x32xf32>
    %63 = math.tanh %62 : vector<1x32xf32>
    %64 = arith.mulf %59, %63 : vector<1x32xf32>
    %65 = vector.extract_strided_slice %5 {offsets = [2, 0], sizes = [1, 128], strides = [1, 1]} : vector<8x128xf32> to vector<1x128xf32>
    %cst_17 = arith.constant dense<0.000000e+00> : vector<1x128xf32>
    %66 = tpu.matmul %64, %6, %cst_17 {dimension_numbers = #tpu.dot_dimension_numbers<[1], [0], [0], [1], [0, 0, 1, 1], [], []>} : vector<1x32xf32>, vector<32x128xf32>, vector<1x128xf32> -> vector<1x128xf32>
    %67 = arith.addf %65, %66 : vector<1x128xf32>
    %68 = vector.extract_strided_slice %67 {offsets = [0, 0], sizes = [1, 32], strides = [1, 1]} : vector<1x128xf32> to vector<1x32xf32>
    %69 = arith.negf %68 : vector<1x32xf32>
    %70 = math.exp %69 : vector<1x32xf32>
    %cst_18 = arith.constant 1.000000e+00 : f32
    %71 = vector.broadcast %cst_18 : f32 to vector<1x32xf32>
    %72 = arith.addf %71, %70 : vector<1x32xf32>
    %73 = arith.divf %71, %72 : vector<1x32xf32>
    %74 = vector.extract_strided_slice %67 {offsets = [0, 32], sizes = [1, 32], strides = [1, 1]} : vector<1x128xf32> to vector<1x32xf32>
    %75 = arith.negf %74 : vector<1x32xf32>
    %76 = math.exp %75 : vector<1x32xf32>
    %cst_19 = arith.constant 1.000000e+00 : f32
    %77 = vector.broadcast %cst_19 : f32 to vector<1x32xf32>
    %78 = arith.addf %77, %76 : vector<1x32xf32>
    %79 = arith.divf %77, %78 : vector<1x32xf32>
    %80 = vector.extract_strided_slice %67 {offsets = [0, 64], sizes = [1, 32], strides = [1, 1]} : vector<1x128xf32> to vector<1x32xf32>
    %81 = math.tanh %80 : vector<1x32xf32>
    %82 = vector.extract_strided_slice %67 {offsets = [0, 96], sizes = [1, 32], strides = [1, 1]} : vector<1x128xf32> to vector<1x32xf32>
    %83 = arith.negf %82 : vector<1x32xf32>
    %84 = math.exp %83 : vector<1x32xf32>
    %cst_20 = arith.constant 1.000000e+00 : f32
    %85 = vector.broadcast %cst_20 : f32 to vector<1x32xf32>
    %86 = arith.addf %85, %84 : vector<1x32xf32>
    %87 = arith.divf %85, %86 : vector<1x32xf32>
    %88 = arith.mulf %79, %62 : vector<1x32xf32>
    %89 = arith.mulf %73, %81 : vector<1x32xf32>
    %90 = arith.addf %88, %89 : vector<1x32xf32>
    %91 = math.tanh %90 : vector<1x32xf32>
    %92 = arith.mulf %87, %91 : vector<1x32xf32>
    %93 = vector.extract_strided_slice %5 {offsets = [3, 0], sizes = [1, 128], strides = [1, 1]} : vector<8x128xf32> to vector<1x128xf32>
    %cst_21 = arith.constant dense<0.000000e+00> : vector<1x128xf32>
    %94 = tpu.matmul %92, %6, %cst_21 {dimension_numbers = #tpu.dot_dimension_numbers<[1], [0], [0], [1], [0, 0, 1, 1], [], []>} : vector<1x32xf32>, vector<32x128xf32>, vector<1x128xf32> -> vector<1x128xf32>
    %95 = arith.addf %93, %94 : vector<1x128xf32>
    %96 = vector.extract_strided_slice %95 {offsets = [0, 0], sizes = [1, 32], strides = [1, 1]} : vector<1x128xf32> to vector<1x32xf32>
    %97 = arith.negf %96 : vector<1x32xf32>
    %98 = math.exp %97 : vector<1x32xf32>
    %cst_22 = arith.constant 1.000000e+00 : f32
    %99 = vector.broadcast %cst_22 : f32 to vector<1x32xf32>
    %100 = arith.addf %99, %98 : vector<1x32xf32>
    %101 = arith.divf %99, %100 : vector<1x32xf32>
    %102 = vector.extract_strided_slice %95 {offsets = [0, 32], sizes = [1, 32], strides = [1, 1]} : vector<1x128xf32> to vector<1x32xf32>
    %103 = arith.negf %102 : vector<1x32xf32>
    %104 = math.exp %103 : vector<1x32xf32>
    %cst_23 = arith.constant 1.000000e+00 : f32
    %105 = vector.broadcast %cst_23 : f32 to vector<1x32xf32>
    %106 = arith.addf %105, %104 : vector<1x32xf32>
    %107 = arith.divf %105, %106 : vector<1x32xf32>
    %108 = vector.extract_strided_slice %95 {offsets = [0, 64], sizes = [1, 32], strides = [1, 1]} : vector<1x128xf32> to vector<1x32xf32>
    %109 = math.tanh %108 : vector<1x32xf32>
    %110 = vector.extract_strided_slice %95 {offsets = [0, 96], sizes = [1, 32], strides = [1, 1]} : vector<1x128xf32> to vector<1x32xf32>
    %111 = arith.negf %110 : vector<1x32xf32>
    %112 = math.exp %111 : vector<1x32xf32>
    %cst_24 = arith.constant 1.000000e+00 : f32
    %113 = vector.broadcast %cst_24 : f32 to vector<1x32xf32>
    %114 = arith.addf %113, %112 : vector<1x32xf32>
    %115 = arith.divf %113, %114 : vector<1x32xf32>
    %116 = arith.mulf %107, %90 : vector<1x32xf32>
    %117 = arith.mulf %101, %109 : vector<1x32xf32>
    %118 = arith.addf %116, %117 : vector<1x32xf32>
    %119 = math.tanh %118 : vector<1x32xf32>
    %120 = arith.mulf %115, %119 : vector<1x32xf32>
    %121 = vector.extract_strided_slice %5 {offsets = [4, 0], sizes = [1, 128], strides = [1, 1]} : vector<8x128xf32> to vector<1x128xf32>
    %cst_25 = arith.constant dense<0.000000e+00> : vector<1x128xf32>
    %122 = tpu.matmul %120, %6, %cst_25 {dimension_numbers = #tpu.dot_dimension_numbers<[1], [0], [0], [1], [0, 0, 1, 1], [], []>} : vector<1x32xf32>, vector<32x128xf32>, vector<1x128xf32> -> vector<1x128xf32>
    %123 = arith.addf %121, %122 : vector<1x128xf32>
    %124 = vector.extract_strided_slice %123 {offsets = [0, 0], sizes = [1, 32], strides = [1, 1]} : vector<1x128xf32> to vector<1x32xf32>
    %125 = arith.negf %124 : vector<1x32xf32>
    %126 = math.exp %125 : vector<1x32xf32>
    %cst_26 = arith.constant 1.000000e+00 : f32
    %127 = vector.broadcast %cst_26 : f32 to vector<1x32xf32>
    %128 = arith.addf %127, %126 : vector<1x32xf32>
    %129 = arith.divf %127, %128 : vector<1x32xf32>
    %130 = vector.extract_strided_slice %123 {offsets = [0, 32], sizes = [1, 32], strides = [1, 1]} : vector<1x128xf32> to vector<1x32xf32>
    %131 = arith.negf %130 : vector<1x32xf32>
    %132 = math.exp %131 : vector<1x32xf32>
    %cst_27 = arith.constant 1.000000e+00 : f32
    %133 = vector.broadcast %cst_27 : f32 to vector<1x32xf32>
    %134 = arith.addf %133, %132 : vector<1x32xf32>
    %135 = arith.divf %133, %134 : vector<1x32xf32>
    %136 = vector.extract_strided_slice %123 {offsets = [0, 64], sizes = [1, 32], strides = [1, 1]} : vector<1x128xf32> to vector<1x32xf32>
    %137 = math.tanh %136 : vector<1x32xf32>
    %138 = vector.extract_strided_slice %123 {offsets = [0, 96], sizes = [1, 32], strides = [1, 1]} : vector<1x128xf32> to vector<1x32xf32>
    %139 = arith.negf %138 : vector<1x32xf32>
    %140 = math.exp %139 : vector<1x32xf32>
    %cst_28 = arith.constant 1.000000e+00 : f32
    %141 = vector.broadcast %cst_28 : f32 to vector<1x32xf32>
    %142 = arith.addf %141, %140 : vector<1x32xf32>
    %143 = arith.divf %141, %142 : vector<1x32xf32>
    %144 = arith.mulf %135, %118 : vector<1x32xf32>
    %145 = arith.mulf %129, %137 : vector<1x32xf32>
    %146 = arith.addf %144, %145 : vector<1x32xf32>
    %147 = math.tanh %146 : vector<1x32xf32>
    %148 = arith.mulf %143, %147 : vector<1x32xf32>
    %149 = vector.extract_strided_slice %5 {offsets = [5, 0], sizes = [1, 128], strides = [1, 1]} : vector<8x128xf32> to vector<1x128xf32>
    %cst_29 = arith.constant dense<0.000000e+00> : vector<1x128xf32>
    %150 = tpu.matmul %148, %6, %cst_29 {dimension_numbers = #tpu.dot_dimension_numbers<[1], [0], [0], [1], [0, 0, 1, 1], [], []>} : vector<1x32xf32>, vector<32x128xf32>, vector<1x128xf32> -> vector<1x128xf32>
    %151 = arith.addf %149, %150 : vector<1x128xf32>
    %152 = vector.extract_strided_slice %151 {offsets = [0, 0], sizes = [1, 32], strides = [1, 1]} : vector<1x128xf32> to vector<1x32xf32>
    %153 = arith.negf %152 : vector<1x32xf32>
    %154 = math.exp %153 : vector<1x32xf32>
    %cst_30 = arith.constant 1.000000e+00 : f32
    %155 = vector.broadcast %cst_30 : f32 to vector<1x32xf32>
    %156 = arith.addf %155, %154 : vector<1x32xf32>
    %157 = arith.divf %155, %156 : vector<1x32xf32>
    %158 = vector.extract_strided_slice %151 {offsets = [0, 32], sizes = [1, 32], strides = [1, 1]} : vector<1x128xf32> to vector<1x32xf32>
    %159 = arith.negf %158 : vector<1x32xf32>
    %160 = math.exp %159 : vector<1x32xf32>
    %cst_31 = arith.constant 1.000000e+00 : f32
    %161 = vector.broadcast %cst_31 : f32 to vector<1x32xf32>
    %162 = arith.addf %161, %160 : vector<1x32xf32>
    %163 = arith.divf %161, %162 : vector<1x32xf32>
    %164 = vector.extract_strided_slice %151 {offsets = [0, 64], sizes = [1, 32], strides = [1, 1]} : vector<1x128xf32> to vector<1x32xf32>
    %165 = math.tanh %164 : vector<1x32xf32>
    %166 = vector.extract_strided_slice %151 {offsets = [0, 96], sizes = [1, 32], strides = [1, 1]} : vector<1x128xf32> to vector<1x32xf32>
    %167 = arith.negf %166 : vector<1x32xf32>
    %168 = math.exp %167 : vector<1x32xf32>
    %cst_32 = arith.constant 1.000000e+00 : f32
    %169 = vector.broadcast %cst_32 : f32 to vector<1x32xf32>
    %170 = arith.addf %169, %168 : vector<1x32xf32>
    %171 = arith.divf %169, %170 : vector<1x32xf32>
    %172 = arith.mulf %163, %146 : vector<1x32xf32>
    %173 = arith.mulf %157, %165 : vector<1x32xf32>
    %174 = arith.addf %172, %173 : vector<1x32xf32>
    %175 = math.tanh %174 : vector<1x32xf32>
    %176 = arith.mulf %171, %175 : vector<1x32xf32>
    %177 = vector.extract_strided_slice %5 {offsets = [6, 0], sizes = [1, 128], strides = [1, 1]} : vector<8x128xf32> to vector<1x128xf32>
    %cst_33 = arith.constant dense<0.000000e+00> : vector<1x128xf32>
    %178 = tpu.matmul %176, %6, %cst_33 {dimension_numbers = #tpu.dot_dimension_numbers<[1], [0], [0], [1], [0, 0, 1, 1], [], []>} : vector<1x32xf32>, vector<32x128xf32>, vector<1x128xf32> -> vector<1x128xf32>
    %179 = arith.addf %177, %178 : vector<1x128xf32>
    %180 = vector.extract_strided_slice %179 {offsets = [0, 0], sizes = [1, 32], strides = [1, 1]} : vector<1x128xf32> to vector<1x32xf32>
    %181 = arith.negf %180 : vector<1x32xf32>
    %182 = math.exp %181 : vector<1x32xf32>
    %cst_34 = arith.constant 1.000000e+00 : f32
    %183 = vector.broadcast %cst_34 : f32 to vector<1x32xf32>
    %184 = arith.addf %183, %182 : vector<1x32xf32>
    %185 = arith.divf %183, %184 : vector<1x32xf32>
    %186 = vector.extract_strided_slice %179 {offsets = [0, 32], sizes = [1, 32], strides = [1, 1]} : vector<1x128xf32> to vector<1x32xf32>
    %187 = arith.negf %186 : vector<1x32xf32>
    %188 = math.exp %187 : vector<1x32xf32>
    %cst_35 = arith.constant 1.000000e+00 : f32
    %189 = vector.broadcast %cst_35 : f32 to vector<1x32xf32>
    %190 = arith.addf %189, %188 : vector<1x32xf32>
    %191 = arith.divf %189, %190 : vector<1x32xf32>
    %192 = vector.extract_strided_slice %179 {offsets = [0, 64], sizes = [1, 32], strides = [1, 1]} : vector<1x128xf32> to vector<1x32xf32>
    %193 = math.tanh %192 : vector<1x32xf32>
    %194 = vector.extract_strided_slice %179 {offsets = [0, 96], sizes = [1, 32], strides = [1, 1]} : vector<1x128xf32> to vector<1x32xf32>
    %195 = arith.negf %194 : vector<1x32xf32>
    %196 = math.exp %195 : vector<1x32xf32>
    %cst_36 = arith.constant 1.000000e+00 : f32
    %197 = vector.broadcast %cst_36 : f32 to vector<1x32xf32>
    %198 = arith.addf %197, %196 : vector<1x32xf32>
    %199 = arith.divf %197, %198 : vector<1x32xf32>
    %200 = arith.mulf %191, %174 : vector<1x32xf32>
    %201 = arith.mulf %185, %193 : vector<1x32xf32>
    %202 = arith.addf %200, %201 : vector<1x32xf32>
    %203 = math.tanh %202 : vector<1x32xf32>
    %204 = arith.mulf %199, %203 : vector<1x32xf32>
    %205 = vector.extract_strided_slice %5 {offsets = [7, 0], sizes = [1, 128], strides = [1, 1]} : vector<8x128xf32> to vector<1x128xf32>
    %cst_37 = arith.constant dense<0.000000e+00> : vector<1x128xf32>
    %206 = tpu.matmul %204, %6, %cst_37 {dimension_numbers = #tpu.dot_dimension_numbers<[1], [0], [0], [1], [0, 0, 1, 1], [], []>} : vector<1x32xf32>, vector<32x128xf32>, vector<1x128xf32> -> vector<1x128xf32>
    %207 = arith.addf %205, %206 : vector<1x128xf32>
    %208 = vector.extract_strided_slice %207 {offsets = [0, 0], sizes = [1, 32], strides = [1, 1]} : vector<1x128xf32> to vector<1x32xf32>
    %209 = arith.negf %208 : vector<1x32xf32>
    %210 = math.exp %209 : vector<1x32xf32>
    %cst_38 = arith.constant 1.000000e+00 : f32
    %211 = vector.broadcast %cst_38 : f32 to vector<1x32xf32>
    %212 = arith.addf %211, %210 : vector<1x32xf32>
    %213 = arith.divf %211, %212 : vector<1x32xf32>
    %214 = vector.extract_strided_slice %207 {offsets = [0, 32], sizes = [1, 32], strides = [1, 1]} : vector<1x128xf32> to vector<1x32xf32>
    %215 = arith.negf %214 : vector<1x32xf32>
    %216 = math.exp %215 : vector<1x32xf32>
    %cst_39 = arith.constant 1.000000e+00 : f32
    %217 = vector.broadcast %cst_39 : f32 to vector<1x32xf32>
    %218 = arith.addf %217, %216 : vector<1x32xf32>
    %219 = arith.divf %217, %218 : vector<1x32xf32>
    %220 = vector.extract_strided_slice %207 {offsets = [0, 64], sizes = [1, 32], strides = [1, 1]} : vector<1x128xf32> to vector<1x32xf32>
    %221 = math.tanh %220 : vector<1x32xf32>
    %222 = vector.extract_strided_slice %207 {offsets = [0, 96], sizes = [1, 32], strides = [1, 1]} : vector<1x128xf32> to vector<1x32xf32>
    %223 = arith.negf %222 : vector<1x32xf32>
    %224 = math.exp %223 : vector<1x32xf32>
    %cst_40 = arith.constant 1.000000e+00 : f32
    %225 = vector.broadcast %cst_40 : f32 to vector<1x32xf32>
    %226 = arith.addf %225, %224 : vector<1x32xf32>
    %227 = arith.divf %225, %226 : vector<1x32xf32>
    %228 = arith.mulf %219, %202 : vector<1x32xf32>
    %229 = arith.mulf %213, %221 : vector<1x32xf32>
    %230 = arith.addf %228, %229 : vector<1x32xf32>
    %231 = math.tanh %230 : vector<1x32xf32>
    %232 = arith.mulf %227, %231 : vector<1x32xf32>
    %233 = tpu.concatenate %36, %64, %92, %120, %148, %176, %204, %232 in 0 : vector<1x32xf32>, vector<1x32xf32>, vector<1x32xf32>, vector<1x32xf32>, vector<1x32xf32>, vector<1x32xf32>, vector<1x32xf32>, vector<1x32xf32> -> vector<8x32xf32>
    %c0_41 = arith.constant 0 : index
    %c0_42 = arith.constant 0 : index
    %234 = vector.load %arg4[%c0_41, %c0_42] : memref<32x128xf32, #tpu.memory_space<vmem>>, vector<32x128xf32>
    %cst_43 = arith.constant dense<0.000000e+00> : vector<8x128xf32>
    %235 = tpu.matmul %233, %234, %cst_43 {dimension_numbers = #tpu.dot_dimension_numbers<[1], [0], [0], [1], [0, 0, 1, 1], [], []>} : vector<8x32xf32>, vector<32x128xf32>, vector<8x128xf32> -> vector<8x128xf32>
    %c0_44 = arith.constant 0 : index
    %c0_45 = arith.constant 0 : index
    %236 = vector.load %arg6[%c0_44, %c0_45] : memref<1x128xf32, #tpu.memory_space<vmem>>, vector<1x128xf32>
    %237 = vector.broadcast %236 : vector<1x128xf32> to vector<8x128xf32>
    %238 = arith.addf %235, %237 : vector<8x128xf32>
    %c0_46 = arith.constant 0 : index
    %c0_47 = arith.constant 0 : index
    %239 = vector.load %arg5[%c0_46, %c0_47] : memref<32x128xf32, #tpu.memory_space<vmem>>, vector<32x128xf32>
    %cst_48 = arith.constant 0.000000e+00 : f32
    %240 = vector.broadcast %cst_48 : f32 to vector<1x32xf32>
    %cst_49 = arith.constant 0.000000e+00 : f32
    %241 = vector.broadcast %cst_49 : f32 to vector<1x32xf32>
    %242 = vector.extract_strided_slice %238 {offsets = [0, 0], sizes = [1, 128], strides = [1, 1]} : vector<8x128xf32> to vector<1x128xf32>
    %cst_50 = arith.constant dense<0.000000e+00> : vector<1x128xf32>
    %243 = tpu.matmul %240, %239, %cst_50 {dimension_numbers = #tpu.dot_dimension_numbers<[1], [0], [0], [1], [0, 0, 1, 1], [], []>} : vector<1x32xf32>, vector<32x128xf32>, vector<1x128xf32> -> vector<1x128xf32>
    %244 = arith.addf %242, %243 : vector<1x128xf32>
    %245 = vector.extract_strided_slice %244 {offsets = [0, 0], sizes = [1, 32], strides = [1, 1]} : vector<1x128xf32> to vector<1x32xf32>
    %246 = arith.negf %245 : vector<1x32xf32>
    %247 = math.exp %246 : vector<1x32xf32>
    %cst_51 = arith.constant 1.000000e+00 : f32
    %248 = vector.broadcast %cst_51 : f32 to vector<1x32xf32>
    %249 = arith.addf %248, %247 : vector<1x32xf32>
    %250 = arith.divf %248, %249 : vector<1x32xf32>
    %251 = vector.extract_strided_slice %244 {offsets = [0, 32], sizes = [1, 32], strides = [1, 1]} : vector<1x128xf32> to vector<1x32xf32>
    %252 = arith.negf %251 : vector<1x32xf32>
    %253 = math.exp %252 : vector<1x32xf32>
    %cst_52 = arith.constant 1.000000e+00 : f32
    %254 = vector.broadcast %cst_52 : f32 to vector<1x32xf32>
    %255 = arith.addf %254, %253 : vector<1x32xf32>
    %256 = arith.divf %254, %255 : vector<1x32xf32>
    %257 = vector.extract_strided_slice %244 {offsets = [0, 64], sizes = [1, 32], strides = [1, 1]} : vector<1x128xf32> to vector<1x32xf32>
    %258 = math.tanh %257 : vector<1x32xf32>
    %259 = vector.extract_strided_slice %244 {offsets = [0, 96], sizes = [1, 32], strides = [1, 1]} : vector<1x128xf32> to vector<1x32xf32>
    %260 = arith.negf %259 : vector<1x32xf32>
    %261 = math.exp %260 : vector<1x32xf32>
    %cst_53 = arith.constant 1.000000e+00 : f32
    %262 = vector.broadcast %cst_53 : f32 to vector<1x32xf32>
    %263 = arith.addf %262, %261 : vector<1x32xf32>
    %264 = arith.divf %262, %263 : vector<1x32xf32>
    %265 = arith.mulf %256, %241 : vector<1x32xf32>
    %266 = arith.mulf %250, %258 : vector<1x32xf32>
    %267 = arith.addf %265, %266 : vector<1x32xf32>
    %268 = math.tanh %267 : vector<1x32xf32>
    %269 = arith.mulf %264, %268 : vector<1x32xf32>
    %270 = vector.extract_strided_slice %238 {offsets = [1, 0], sizes = [1, 128], strides = [1, 1]} : vector<8x128xf32> to vector<1x128xf32>
    %cst_54 = arith.constant dense<0.000000e+00> : vector<1x128xf32>
    %271 = tpu.matmul %269, %239, %cst_54 {dimension_numbers = #tpu.dot_dimension_numbers<[1], [0], [0], [1], [0, 0, 1, 1], [], []>} : vector<1x32xf32>, vector<32x128xf32>, vector<1x128xf32> -> vector<1x128xf32>
    %272 = arith.addf %270, %271 : vector<1x128xf32>
    %273 = vector.extract_strided_slice %272 {offsets = [0, 0], sizes = [1, 32], strides = [1, 1]} : vector<1x128xf32> to vector<1x32xf32>
    %274 = arith.negf %273 : vector<1x32xf32>
    %275 = math.exp %274 : vector<1x32xf32>
    %cst_55 = arith.constant 1.000000e+00 : f32
    %276 = vector.broadcast %cst_55 : f32 to vector<1x32xf32>
    %277 = arith.addf %276, %275 : vector<1x32xf32>
    %278 = arith.divf %276, %277 : vector<1x32xf32>
    %279 = vector.extract_strided_slice %272 {offsets = [0, 32], sizes = [1, 32], strides = [1, 1]} : vector<1x128xf32> to vector<1x32xf32>
    %280 = arith.negf %279 : vector<1x32xf32>
    %281 = math.exp %280 : vector<1x32xf32>
    %cst_56 = arith.constant 1.000000e+00 : f32
    %282 = vector.broadcast %cst_56 : f32 to vector<1x32xf32>
    %283 = arith.addf %282, %281 : vector<1x32xf32>
    %284 = arith.divf %282, %283 : vector<1x32xf32>
    %285 = vector.extract_strided_slice %272 {offsets = [0, 64], sizes = [1, 32], strides = [1, 1]} : vector<1x128xf32> to vector<1x32xf32>
    %286 = math.tanh %285 : vector<1x32xf32>
    %287 = vector.extract_strided_slice %272 {offsets = [0, 96], sizes = [1, 32], strides = [1, 1]} : vector<1x128xf32> to vector<1x32xf32>
    %288 = arith.negf %287 : vector<1x32xf32>
    %289 = math.exp %288 : vector<1x32xf32>
    %cst_57 = arith.constant 1.000000e+00 : f32
    %290 = vector.broadcast %cst_57 : f32 to vector<1x32xf32>
    %291 = arith.addf %290, %289 : vector<1x32xf32>
    %292 = arith.divf %290, %291 : vector<1x32xf32>
    %293 = arith.mulf %284, %267 : vector<1x32xf32>
    %294 = arith.mulf %278, %286 : vector<1x32xf32>
    %295 = arith.addf %293, %294 : vector<1x32xf32>
    %296 = math.tanh %295 : vector<1x32xf32>
    %297 = arith.mulf %292, %296 : vector<1x32xf32>
    %298 = vector.extract_strided_slice %238 {offsets = [2, 0], sizes = [1, 128], strides = [1, 1]} : vector<8x128xf32> to vector<1x128xf32>
    %cst_58 = arith.constant dense<0.000000e+00> : vector<1x128xf32>
    %299 = tpu.matmul %297, %239, %cst_58 {dimension_numbers = #tpu.dot_dimension_numbers<[1], [0], [0], [1], [0, 0, 1, 1], [], []>} : vector<1x32xf32>, vector<32x128xf32>, vector<1x128xf32> -> vector<1x128xf32>
    %300 = arith.addf %298, %299 : vector<1x128xf32>
    %301 = vector.extract_strided_slice %300 {offsets = [0, 0], sizes = [1, 32], strides = [1, 1]} : vector<1x128xf32> to vector<1x32xf32>
    %302 = arith.negf %301 : vector<1x32xf32>
    %303 = math.exp %302 : vector<1x32xf32>
    %cst_59 = arith.constant 1.000000e+00 : f32
    %304 = vector.broadcast %cst_59 : f32 to vector<1x32xf32>
    %305 = arith.addf %304, %303 : vector<1x32xf32>
    %306 = arith.divf %304, %305 : vector<1x32xf32>
    %307 = vector.extract_strided_slice %300 {offsets = [0, 32], sizes = [1, 32], strides = [1, 1]} : vector<1x128xf32> to vector<1x32xf32>
    %308 = arith.negf %307 : vector<1x32xf32>
    %309 = math.exp %308 : vector<1x32xf32>
    %cst_60 = arith.constant 1.000000e+00 : f32
    %310 = vector.broadcast %cst_60 : f32 to vector<1x32xf32>
    %311 = arith.addf %310, %309 : vector<1x32xf32>
    %312 = arith.divf %310, %311 : vector<1x32xf32>
    %313 = vector.extract_strided_slice %300 {offsets = [0, 64], sizes = [1, 32], strides = [1, 1]} : vector<1x128xf32> to vector<1x32xf32>
    %314 = math.tanh %313 : vector<1x32xf32>
    %315 = vector.extract_strided_slice %300 {offsets = [0, 96], sizes = [1, 32], strides = [1, 1]} : vector<1x128xf32> to vector<1x32xf32>
    %316 = arith.negf %315 : vector<1x32xf32>
    %317 = math.exp %316 : vector<1x32xf32>
    %cst_61 = arith.constant 1.000000e+00 : f32
    %318 = vector.broadcast %cst_61 : f32 to vector<1x32xf32>
    %319 = arith.addf %318, %317 : vector<1x32xf32>
    %320 = arith.divf %318, %319 : vector<1x32xf32>
    %321 = arith.mulf %312, %295 : vector<1x32xf32>
    %322 = arith.mulf %306, %314 : vector<1x32xf32>
    %323 = arith.addf %321, %322 : vector<1x32xf32>
    %324 = math.tanh %323 : vector<1x32xf32>
    %325 = arith.mulf %320, %324 : vector<1x32xf32>
    %326 = vector.extract_strided_slice %238 {offsets = [3, 0], sizes = [1, 128], strides = [1, 1]} : vector<8x128xf32> to vector<1x128xf32>
    %cst_62 = arith.constant dense<0.000000e+00> : vector<1x128xf32>
    %327 = tpu.matmul %325, %239, %cst_62 {dimension_numbers = #tpu.dot_dimension_numbers<[1], [0], [0], [1], [0, 0, 1, 1], [], []>} : vector<1x32xf32>, vector<32x128xf32>, vector<1x128xf32> -> vector<1x128xf32>
    %328 = arith.addf %326, %327 : vector<1x128xf32>
    %329 = vector.extract_strided_slice %328 {offsets = [0, 0], sizes = [1, 32], strides = [1, 1]} : vector<1x128xf32> to vector<1x32xf32>
    %330 = arith.negf %329 : vector<1x32xf32>
    %331 = math.exp %330 : vector<1x32xf32>
    %cst_63 = arith.constant 1.000000e+00 : f32
    %332 = vector.broadcast %cst_63 : f32 to vector<1x32xf32>
    %333 = arith.addf %332, %331 : vector<1x32xf32>
    %334 = arith.divf %332, %333 : vector<1x32xf32>
    %335 = vector.extract_strided_slice %328 {offsets = [0, 32], sizes = [1, 32], strides = [1, 1]} : vector<1x128xf32> to vector<1x32xf32>
    %336 = arith.negf %335 : vector<1x32xf32>
    %337 = math.exp %336 : vector<1x32xf32>
    %cst_64 = arith.constant 1.000000e+00 : f32
    %338 = vector.broadcast %cst_64 : f32 to vector<1x32xf32>
    %339 = arith.addf %338, %337 : vector<1x32xf32>
    %340 = arith.divf %338, %339 : vector<1x32xf32>
    %341 = vector.extract_strided_slice %328 {offsets = [0, 64], sizes = [1, 32], strides = [1, 1]} : vector<1x128xf32> to vector<1x32xf32>
    %342 = math.tanh %341 : vector<1x32xf32>
    %343 = vector.extract_strided_slice %328 {offsets = [0, 96], sizes = [1, 32], strides = [1, 1]} : vector<1x128xf32> to vector<1x32xf32>
    %344 = arith.negf %343 : vector<1x32xf32>
    %345 = math.exp %344 : vector<1x32xf32>
    %cst_65 = arith.constant 1.000000e+00 : f32
    %346 = vector.broadcast %cst_65 : f32 to vector<1x32xf32>
    %347 = arith.addf %346, %345 : vector<1x32xf32>
    %348 = arith.divf %346, %347 : vector<1x32xf32>
    %349 = arith.mulf %340, %323 : vector<1x32xf32>
    %350 = arith.mulf %334, %342 : vector<1x32xf32>
    %351 = arith.addf %349, %350 : vector<1x32xf32>
    %352 = math.tanh %351 : vector<1x32xf32>
    %353 = arith.mulf %348, %352 : vector<1x32xf32>
    %354 = vector.extract_strided_slice %238 {offsets = [4, 0], sizes = [1, 128], strides = [1, 1]} : vector<8x128xf32> to vector<1x128xf32>
    %cst_66 = arith.constant dense<0.000000e+00> : vector<1x128xf32>
    %355 = tpu.matmul %353, %239, %cst_66 {dimension_numbers = #tpu.dot_dimension_numbers<[1], [0], [0], [1], [0, 0, 1, 1], [], []>} : vector<1x32xf32>, vector<32x128xf32>, vector<1x128xf32> -> vector<1x128xf32>
    %356 = arith.addf %354, %355 : vector<1x128xf32>
    %357 = vector.extract_strided_slice %356 {offsets = [0, 0], sizes = [1, 32], strides = [1, 1]} : vector<1x128xf32> to vector<1x32xf32>
    %358 = arith.negf %357 : vector<1x32xf32>
    %359 = math.exp %358 : vector<1x32xf32>
    %cst_67 = arith.constant 1.000000e+00 : f32
    %360 = vector.broadcast %cst_67 : f32 to vector<1x32xf32>
    %361 = arith.addf %360, %359 : vector<1x32xf32>
    %362 = arith.divf %360, %361 : vector<1x32xf32>
    %363 = vector.extract_strided_slice %356 {offsets = [0, 32], sizes = [1, 32], strides = [1, 1]} : vector<1x128xf32> to vector<1x32xf32>
    %364 = arith.negf %363 : vector<1x32xf32>
    %365 = math.exp %364 : vector<1x32xf32>
    %cst_68 = arith.constant 1.000000e+00 : f32
    %366 = vector.broadcast %cst_68 : f32 to vector<1x32xf32>
    %367 = arith.addf %366, %365 : vector<1x32xf32>
    %368 = arith.divf %366, %367 : vector<1x32xf32>
    %369 = vector.extract_strided_slice %356 {offsets = [0, 64], sizes = [1, 32], strides = [1, 1]} : vector<1x128xf32> to vector<1x32xf32>
    %370 = math.tanh %369 : vector<1x32xf32>
    %371 = vector.extract_strided_slice %356 {offsets = [0, 96], sizes = [1, 32], strides = [1, 1]} : vector<1x128xf32> to vector<1x32xf32>
    %372 = arith.negf %371 : vector<1x32xf32>
    %373 = math.exp %372 : vector<1x32xf32>
    %cst_69 = arith.constant 1.000000e+00 : f32
    %374 = vector.broadcast %cst_69 : f32 to vector<1x32xf32>
    %375 = arith.addf %374, %373 : vector<1x32xf32>
    %376 = arith.divf %374, %375 : vector<1x32xf32>
    %377 = arith.mulf %368, %351 : vector<1x32xf32>
    %378 = arith.mulf %362, %370 : vector<1x32xf32>
    %379 = arith.addf %377, %378 : vector<1x32xf32>
    %380 = math.tanh %379 : vector<1x32xf32>
    %381 = arith.mulf %376, %380 : vector<1x32xf32>
    %382 = vector.extract_strided_slice %238 {offsets = [5, 0], sizes = [1, 128], strides = [1, 1]} : vector<8x128xf32> to vector<1x128xf32>
    %cst_70 = arith.constant dense<0.000000e+00> : vector<1x128xf32>
    %383 = tpu.matmul %381, %239, %cst_70 {dimension_numbers = #tpu.dot_dimension_numbers<[1], [0], [0], [1], [0, 0, 1, 1], [], []>} : vector<1x32xf32>, vector<32x128xf32>, vector<1x128xf32> -> vector<1x128xf32>
    %384 = arith.addf %382, %383 : vector<1x128xf32>
    %385 = vector.extract_strided_slice %384 {offsets = [0, 0], sizes = [1, 32], strides = [1, 1]} : vector<1x128xf32> to vector<1x32xf32>
    %386 = arith.negf %385 : vector<1x32xf32>
    %387 = math.exp %386 : vector<1x32xf32>
    %cst_71 = arith.constant 1.000000e+00 : f32
    %388 = vector.broadcast %cst_71 : f32 to vector<1x32xf32>
    %389 = arith.addf %388, %387 : vector<1x32xf32>
    %390 = arith.divf %388, %389 : vector<1x32xf32>
    %391 = vector.extract_strided_slice %384 {offsets = [0, 32], sizes = [1, 32], strides = [1, 1]} : vector<1x128xf32> to vector<1x32xf32>
    %392 = arith.negf %391 : vector<1x32xf32>
    %393 = math.exp %392 : vector<1x32xf32>
    %cst_72 = arith.constant 1.000000e+00 : f32
    %394 = vector.broadcast %cst_72 : f32 to vector<1x32xf32>
    %395 = arith.addf %394, %393 : vector<1x32xf32>
    %396 = arith.divf %394, %395 : vector<1x32xf32>
    %397 = vector.extract_strided_slice %384 {offsets = [0, 64], sizes = [1, 32], strides = [1, 1]} : vector<1x128xf32> to vector<1x32xf32>
    %398 = math.tanh %397 : vector<1x32xf32>
    %399 = vector.extract_strided_slice %384 {offsets = [0, 96], sizes = [1, 32], strides = [1, 1]} : vector<1x128xf32> to vector<1x32xf32>
    %400 = arith.negf %399 : vector<1x32xf32>
    %401 = math.exp %400 : vector<1x32xf32>
    %cst_73 = arith.constant 1.000000e+00 : f32
    %402 = vector.broadcast %cst_73 : f32 to vector<1x32xf32>
    %403 = arith.addf %402, %401 : vector<1x32xf32>
    %404 = arith.divf %402, %403 : vector<1x32xf32>
    %405 = arith.mulf %396, %379 : vector<1x32xf32>
    %406 = arith.mulf %390, %398 : vector<1x32xf32>
    %407 = arith.addf %405, %406 : vector<1x32xf32>
    %408 = math.tanh %407 : vector<1x32xf32>
    %409 = arith.mulf %404, %408 : vector<1x32xf32>
    %410 = vector.extract_strided_slice %238 {offsets = [6, 0], sizes = [1, 128], strides = [1, 1]} : vector<8x128xf32> to vector<1x128xf32>
    %cst_74 = arith.constant dense<0.000000e+00> : vector<1x128xf32>
    %411 = tpu.matmul %409, %239, %cst_74 {dimension_numbers = #tpu.dot_dimension_numbers<[1], [0], [0], [1], [0, 0, 1, 1], [], []>} : vector<1x32xf32>, vector<32x128xf32>, vector<1x128xf32> -> vector<1x128xf32>
    %412 = arith.addf %410, %411 : vector<1x128xf32>
    %413 = vector.extract_strided_slice %412 {offsets = [0, 0], sizes = [1, 32], strides = [1, 1]} : vector<1x128xf32> to vector<1x32xf32>
    %414 = arith.negf %413 : vector<1x32xf32>
    %415 = math.exp %414 : vector<1x32xf32>
    %cst_75 = arith.constant 1.000000e+00 : f32
    %416 = vector.broadcast %cst_75 : f32 to vector<1x32xf32>
    %417 = arith.addf %416, %415 : vector<1x32xf32>
    %418 = arith.divf %416, %417 : vector<1x32xf32>
    %419 = vector.extract_strided_slice %412 {offsets = [0, 32], sizes = [1, 32], strides = [1, 1]} : vector<1x128xf32> to vector<1x32xf32>
    %420 = arith.negf %419 : vector<1x32xf32>
    %421 = math.exp %420 : vector<1x32xf32>
    %cst_76 = arith.constant 1.000000e+00 : f32
    %422 = vector.broadcast %cst_76 : f32 to vector<1x32xf32>
    %423 = arith.addf %422, %421 : vector<1x32xf32>
    %424 = arith.divf %422, %423 : vector<1x32xf32>
    %425 = vector.extract_strided_slice %412 {offsets = [0, 64], sizes = [1, 32], strides = [1, 1]} : vector<1x128xf32> to vector<1x32xf32>
    %426 = math.tanh %425 : vector<1x32xf32>
    %427 = vector.extract_strided_slice %412 {offsets = [0, 96], sizes = [1, 32], strides = [1, 1]} : vector<1x128xf32> to vector<1x32xf32>
    %428 = arith.negf %427 : vector<1x32xf32>
    %429 = math.exp %428 : vector<1x32xf32>
    %cst_77 = arith.constant 1.000000e+00 : f32
    %430 = vector.broadcast %cst_77 : f32 to vector<1x32xf32>
    %431 = arith.addf %430, %429 : vector<1x32xf32>
    %432 = arith.divf %430, %431 : vector<1x32xf32>
    %433 = arith.mulf %424, %407 : vector<1x32xf32>
    %434 = arith.mulf %418, %426 : vector<1x32xf32>
    %435 = arith.addf %433, %434 : vector<1x32xf32>
    %436 = math.tanh %435 : vector<1x32xf32>
    %437 = arith.mulf %432, %436 : vector<1x32xf32>
    %438 = vector.extract_strided_slice %238 {offsets = [7, 0], sizes = [1, 128], strides = [1, 1]} : vector<8x128xf32> to vector<1x128xf32>
    %cst_78 = arith.constant dense<0.000000e+00> : vector<1x128xf32>
    %439 = tpu.matmul %437, %239, %cst_78 {dimension_numbers = #tpu.dot_dimension_numbers<[1], [0], [0], [1], [0, 0, 1, 1], [], []>} : vector<1x32xf32>, vector<32x128xf32>, vector<1x128xf32> -> vector<1x128xf32>
    %440 = arith.addf %438, %439 : vector<1x128xf32>
    %441 = vector.extract_strided_slice %440 {offsets = [0, 0], sizes = [1, 32], strides = [1, 1]} : vector<1x128xf32> to vector<1x32xf32>
    %442 = arith.negf %441 : vector<1x32xf32>
    %443 = math.exp %442 : vector<1x32xf32>
    %cst_79 = arith.constant 1.000000e+00 : f32
    %444 = vector.broadcast %cst_79 : f32 to vector<1x32xf32>
    %445 = arith.addf %444, %443 : vector<1x32xf32>
    %446 = arith.divf %444, %445 : vector<1x32xf32>
    %447 = vector.extract_strided_slice %440 {offsets = [0, 32], sizes = [1, 32], strides = [1, 1]} : vector<1x128xf32> to vector<1x32xf32>
    %448 = arith.negf %447 : vector<1x32xf32>
    %449 = math.exp %448 : vector<1x32xf32>
    %cst_80 = arith.constant 1.000000e+00 : f32
    %450 = vector.broadcast %cst_80 : f32 to vector<1x32xf32>
    %451 = arith.addf %450, %449 : vector<1x32xf32>
    %452 = arith.divf %450, %451 : vector<1x32xf32>
    %453 = vector.extract_strided_slice %440 {offsets = [0, 64], sizes = [1, 32], strides = [1, 1]} : vector<1x128xf32> to vector<1x32xf32>
    %454 = math.tanh %453 : vector<1x32xf32>
    %455 = vector.extract_strided_slice %440 {offsets = [0, 96], sizes = [1, 32], strides = [1, 1]} : vector<1x128xf32> to vector<1x32xf32>
    %456 = arith.negf %455 : vector<1x32xf32>
    %457 = math.exp %456 : vector<1x32xf32>
    %cst_81 = arith.constant 1.000000e+00 : f32
    %458 = vector.broadcast %cst_81 : f32 to vector<1x32xf32>
    %459 = arith.addf %458, %457 : vector<1x32xf32>
    %460 = arith.divf %458, %459 : vector<1x32xf32>
    %461 = arith.mulf %452, %435 : vector<1x32xf32>
    %462 = arith.mulf %446, %454 : vector<1x32xf32>
    %463 = arith.addf %461, %462 : vector<1x32xf32>
    %464 = math.tanh %463 : vector<1x32xf32>
    %465 = arith.mulf %460, %464 : vector<1x32xf32>
    %466 = tpu.concatenate %269, %297, %325, %353, %381, %409, %437, %465 in 0 : vector<1x32xf32>, vector<1x32xf32>, vector<1x32xf32>, vector<1x32xf32>, vector<1x32xf32>, vector<1x32xf32>, vector<1x32xf32>, vector<1x32xf32> -> vector<8x32xf32>
    %c0_82 = arith.constant 0 : index
    %c0_83 = arith.constant 0 : index
    %467 = vector.load %arg7[%c0_82, %c0_83] : memref<32x128xf32, #tpu.memory_space<vmem>>, vector<32x128xf32>
    %cst_84 = arith.constant dense<0.000000e+00> : vector<8x128xf32>
    %468 = tpu.matmul %466, %467, %cst_84 {dimension_numbers = #tpu.dot_dimension_numbers<[1], [0], [0], [1], [0, 0, 1, 1], [], []>} : vector<8x32xf32>, vector<32x128xf32>, vector<8x128xf32> -> vector<8x128xf32>
    %c0_85 = arith.constant 0 : index
    %c0_86 = arith.constant 0 : index
    %469 = vector.load %arg8[%c0_85, %c0_86] : memref<1x128xf32, #tpu.memory_space<vmem>>, vector<1x128xf32>
    %470 = vector.broadcast %469 : vector<1x128xf32> to vector<8x128xf32>
    %471 = arith.addf %468, %470 : vector<8x128xf32>
    %c0_87 = arith.constant 0 : index
    %c0_88 = arith.constant 0 : index
    %472 = vector.load %arg9[%c0_87, %c0_88] : memref<128x128xf32, #tpu.memory_space<vmem>>, vector<128x128xf32>
    %cst_89 = arith.constant dense<0.000000e+00> : vector<8x128xf32>
    %473 = tpu.matmul %471, %472, %cst_89 {dimension_numbers = #tpu.dot_dimension_numbers<[1], [0], [0], [1], [0, 0, 1, 1], [], []>} : vector<8x128xf32>, vector<128x128xf32>, vector<8x128xf32> -> vector<8x128xf32>
    %c0_90 = arith.constant 0 : index
    %c0_91 = arith.constant 0 : index
    %474 = vector.load %arg10[%c0_90, %c0_91] : memref<1x128xf32, #tpu.memory_space<vmem>>, vector<1x128xf32>
    %475 = vector.broadcast %474 : vector<1x128xf32> to vector<8x128xf32>
    %476 = arith.addf %473, %475 : vector<8x128xf32>
    %c0_92 = arith.constant 0 : index
    %c0_93 = arith.constant 0 : index
    %477 = vector.load %arg11[%c0_92, %c0_93] : memref<8x128xf32, #tpu.memory_space<vmem>>, vector<8x128xf32>
    tpu.vector_store %arg11[%c0_92, %c0_93], %476 {strides = array<i32>} : memref<8x128xf32, #tpu.memory_space<vmem>>, vector<8x128xf32>,
    return
  }
}

</mosaic_0001>

<llo_original>
// kernel: lstm_model_forward.1
$region0: #{lstm_model_forward.1}
  #allocation0 [shape = 'u32[]', space=smem, size = 0x4, offset = 0x4, fixed_abs, tag = 'smem constant byte address 0x4 - core index']
  #allocation1 [shape = 'u32[144,128]{1,0:T(1,128)}', space=vmem, size = 0x12000, scoped, tag = 'internal scratch']
  %s0 = inlined_call_operand.hbm [shape: f32[8,16], index: 0, kind: input, shape index: {}]
  %s1 = inlined_call_operand.hbm [shape: f32[16,128], index: 1, kind: input, shape index: {}]
  %s2 = inlined_call_operand.hbm [shape: f32[32,128], index: 2, kind: input, shape index: {}]
  %s3 = inlined_call_operand.vmem [shape: f32[1,128], index: 3, kind: input, shape index: {}]
  %s4 = inlined_call_operand.hbm [shape: f32[32,128], index: 4, kind: input, shape index: {}]
  %s5 = inlined_call_operand.hbm [shape: f32[32,128], index: 5, kind: input, shape index: {}]
  %s6 = inlined_call_operand.vmem [shape: f32[1,128], index: 6, kind: input, shape index: {}]
  %s7 = inlined_call_operand.hbm [shape: f32[32,128], index: 7, kind: input, shape index: {}]
  %s8 = inlined_call_operand.vmem [shape: f32[1,128], index: 8, kind: input, shape index: {}]
  %s9 = inlined_call_operand.hbm [shape: f32[128,128], index: 9, kind: input, shape index: {}]
  %s10 = inlined_call_operand.vmem [shape: f32[1,128], index: 10, kind: input, shape index: {}]
  %s11 = inlined_call_operand.vmem [shape: f32[8,128], index: 11, kind: output, shape index: {}]
  %s12 = sld [smem:[#allocation0]]
  $region82: #{lstm_model_forward.1} parent=0
    _
  %s14 = ssub.s32 1, %s12
  %s15 = scalar_select 0, %s14, %s12
  $region1: #{lstm_model_forward.1} parent=0
    #allocation2 [shape = 'u8[4096]{0}', space=vmem, size = 0x1000, scoped, tag = 'input window, operand 0, single buffered']
    #allocation3 [shape = 's32[1]{0}', space=sflag, size = 0x4, scoped, tag = 'scoped memory for lstm_model_forward.1']
    #allocation4 [shape = 'u8[8192]{0}', space=vmem, size = 0x2000, scoped, tag = 'input window, operand 1, single buffered']
    #allocation5 [shape = 's32[1]{0}', space=sflag, size = 0x4, scoped, tag = 'scoped memory for lstm_model_forward.1']
    #allocation6 [shape = 'u8[16384]{0}', space=vmem, size = 0x4000, scoped, tag = 'input window, operand 2, single buffered']
    #allocation7 [shape = 'u8[16384]{0}', space=vmem, size = 0x4000, scoped, tag = 'input window, operand 4, single buffered']
    #allocation8 [shape = 's32[1]{0}', space=sflag, size = 0x4, scoped, tag = 'scoped memory for lstm_model_forward.1']
    #allocation9 [shape = 'u8[16384]{0}', space=vmem, size = 0x4000, scoped, tag = 'input window, operand 5, single buffered']
    #allocation10 [shape = 'u8[16384]{0}', space=vmem, size = 0x4000, scoped, tag = 'input window, operand 7, single buffered']
    #allocation11 [shape = 's32[1]{0}', space=sflag, size = 0x4, scoped, tag = 'scoped memory for lstm_model_forward.1']
    #allocation12 [shape = 'u8[65536]{0}', space=vmem, size = 0x10000, scoped, tag = 'input window, operand 9, single buffered']
    %16 = vsyncpa [#allocation3], 0
    %17 = vsyncpa [#allocation5], 0
    %18 = vsyncpa [#allocation8], 0
    %19 = vsyncpa [#allocation11], 0
    // Predicated region
    $region2: #{lstm_model_forward.1} parent=1 // pred_check
      _
    $region3: #{lstm_model_forward.1} parent=1 // pred_check_branch
      %21 = sbr.rel (0) target = $region5
    $region4: #{lstm_model_forward.1} parent=1 // pred_region
      %s23 = ssub.s32 128, 128
      %24 = vsyncadd [#allocation3], %s23
      %s26 = sshll.u32 [#allocation2], 4
      %s27 = int_to_ptr.vmem [resolvable:$true] %s26
      %29 = dma.hbm_to_vmem [thread:$0]  %s0, 128, %s27, [#allocation3]
    $region5: #{lstm_model_forward.1} parent=1 // pred_fallthru
      _
    // Predicated region
    $region6: #{lstm_model_forward.1} parent=1 // pred_check
      _
    $region7: #{lstm_model_forward.1} parent=1 // pred_check_branch
      %31 = sbr.rel (0) target = $region9
    $region8: #{lstm_model_forward.1} parent=1 // pred_region
      %s33 = ssub.s32 256, 256
      %34 = vsyncadd [#allocation5], %s33
      %s35 = sshll.u32 [#allocation4], 4
      %s36 = int_to_ptr.vmem [resolvable:$true] %s35
      %41 = dma.hbm_to_vmem [thread:$0]  %s1, 256, %s36, [#allocation5], 128, 128, 8
    $region9: #{lstm_model_forward.1} parent=1 // pred_fallthru
      _
    // Predicated region
    $region10: #{lstm_model_forward.1} parent=1 // pred_check
      _
    $region11: #{lstm_model_forward.1} parent=1 // pred_check_branch
      %43 = sbr.rel (0) target = $region13
    $region12: #{lstm_model_forward.1} parent=1 // pred_region
      %s45 = ssub.s32 512, 512
      %46 = vsyncadd [#allocation5], %s45
      %s47 = sshll.u32 [#allocation6], 4
      %s48 = int_to_ptr.vmem [resolvable:$true] %s47
      %53 = dma.hbm_to_vmem [thread:$0]  %s2, 512, %s48, [#allocation5], 128, 128, 8
    $region13: #{lstm_model_forward.1} parent=1 // pred_fallthru
      _
    // Predicated region
    $region14: #{lstm_model_forward.1} parent=1 // pred_check
      _
    $region15: #{lstm_model_forward.1} parent=1 // pred_check_branch
      %55 = sbr.rel (0) target = $region17
    $region16: #{lstm_model_forward.1} parent=1 // pred_region
      _
    $region17: #{lstm_model_forward.1} parent=1 // pred_fallthru
      _
    // Predicated region
    $region18: #{lstm_model_forward.1} parent=1 // pred_check
      _
    $region19: #{lstm_model_forward.1} parent=1 // pred_check_branch
      %57 = sbr.rel (0) target = $region21
    $region20: #{lstm_model_forward.1} parent=1 // pred_region
      %s59 = ssub.s32 512, 512
      %60 = vsyncadd [#allocation8], %s59
      %s61 = sshll.u32 [#allocation7], 4
      %s62 = int_to_ptr.vmem [resolvable:$true] %s61
      %67 = dma.hbm_to_vmem [thread:$0]  %s4, 512, %s62, [#allocation8], 128, 128, 8
    $region21: #{lstm_model_forward.1} parent=1 // pred_fallthru
      _
    // Predicated region
    $region22: #{lstm_model_forward.1} parent=1 // pred_check
      _
    $region23: #{lstm_model_forward.1} parent=1 // pred_check_branch
      %69 = sbr.rel (0) target = $region25
    $region24: #{lstm_model_forward.1} parent=1 // pred_region
      %s71 = ssub.s32 512, 512
      %72 = vsyncadd [#allocation8], %s71
      %s73 = sshll.u32 [#allocation9], 4
      %s74 = int_to_ptr.vmem [resolvable:$true] %s73
      %79 = dma.hbm_to_vmem [thread:$0]  %s5, 512, %s74, [#allocation8], 128, 128, 8
    $region25: #{lstm_model_forward.1} parent=1 // pred_fallthru
      _
    // Predicated region
    $region26: #{lstm_model_forward.1} parent=1 // pred_check
      _
    $region27: #{lstm_model_forward.1} parent=1 // pred_check_branch
      %81 = sbr.rel (0) target = $region29
    $region28: #{lstm_model_forward.1} parent=1 // pred_region
      _
    $region29: #{lstm_model_forward.1} parent=1 // pred_fallthru
      _
    // Predicated region
    $region30: #{lstm_model_forward.1} parent=1 // pred_check
      _
    $region31: #{lstm_model_forward.1} parent=1 // pred_check_branch
      %83 = sbr.rel (0) target = $region33
    $region32: #{lstm_model_forward.1} parent=1 // pred_region
      %s85 = ssub.s32 512, 512
      %86 = vsyncadd [#allocation11], %s85
      %s87 = sshll.u32 [#allocation10], 4
      %s88 = int_to_ptr.vmem [resolvable:$true] %s87
      %93 = dma.hbm_to_vmem [thread:$0]  %s7, 512, %s88, [#allocation11], 128, 128, 8
    $region33: #{lstm_model_forward.1} parent=1 // pred_fallthru
      _
    // Predicated region
    $region34: #{lstm_model_forward.1} parent=1 // pred_check
      _
    $region35: #{lstm_model_forward.1} parent=1 // pred_check_branch
      %95 = sbr.rel (0) target = $region37
    $region36: #{lstm_model_forward.1} parent=1 // pred_region
      _
    $region37: #{lstm_model_forward.1} parent=1 // pred_fallthru
      _
    // Predicated region
    $region38: #{lstm_model_forward.1} parent=1 // pred_check
      _
    $region39: #{lstm_model_forward.1} parent=1 // pred_check_branch
      %97 = sbr.rel (0) target = $region41
    $region40: #{lstm_model_forward.1} parent=1 // pred_region
      %s99 = ssub.s32 2048, 2048
      %100 = vsyncadd [#allocation11], %s99
      %s101 = sshll.u32 [#allocation12], 4
      %s102 = int_to_ptr.vmem [resolvable:$true] %s101
      %107 = dma.hbm_to_vmem [thread:$0]  %s9, 2048, %s102, [#allocation11], 128, 128, 8
    $region41: #{lstm_model_forward.1} parent=1 // pred_fallthru
      _
    // Predicated region
    $region42: #{lstm_model_forward.1} parent=1 // pred_check
      _
    $region43: #{lstm_model_forward.1} parent=1 // pred_check_branch
      %109 = sbr.rel (0) target = $region45
    $region44: #{lstm_model_forward.1} parent=1 // pred_region
      _
    $region45: #{lstm_model_forward.1} parent=1 // pred_fallthru
      _
    // Predicated region
    $region46: #{lstm_model_forward.1} parent=1 // pred_check
      _
    $region47: #{lstm_model_forward.1} parent=1 // pred_check_branch
      %111 = sbr.rel (0) target = $region49
    $region48: #{lstm_model_forward.1} parent=1 // pred_region
      %112 = dma.done [#allocation3], 128
    $region49: #{lstm_model_forward.1} parent=1 // pred_fallthru
      _
    // Predicated region
    $region50: #{lstm_model_forward.1} parent=1 // pred_check
      _
    $region51: #{lstm_model_forward.1} parent=1 // pred_check_branch
      %114 = sbr.rel (0) target = $region53
    $region52: #{lstm_model_forward.1} parent=1 // pred_region
      %115 = dma.done [#allocation5], 256
    $region53: #{lstm_model_forward.1} parent=1 // pred_fallthru
      _
    // Predicated region
    $region54: #{lstm_model_forward.1} parent=1 // pred_check
      _
    $region55: #{lstm_model_forward.1} parent=1 // pred_check_branch
      %117 = sbr.rel (0) target = $region57
    $region56: #{lstm_model_forward.1} parent=1 // pred_region
      %118 = dma.done [#allocation5], 512
    $region57: #{lstm_model_forward.1} parent=1 // pred_fallthru
      _
    // Predicated region
    $region58: #{lstm_model_forward.1} parent=1 // pred_check
      _
    $region59: #{lstm_model_forward.1} parent=1 // pred_check_branch
      %120 = sbr.rel (0) target = $region61
    $region60: #{lstm_model_forward.1} parent=1 // pred_region
      %121 = dma.done [#allocation8], 512
    $region61: #{lstm_model_forward.1} parent=1 // pred_fallthru
      _
    // Predicated region
    $region62: #{lstm_model_forward.1} parent=1 // pred_check
      _
    $region63: #{lstm_model_forward.1} parent=1 // pred_check_branch
      %123 = sbr.rel (0) target = $region65
    $region64: #{lstm_model_forward.1} parent=1 // pred_region
      %124 = dma.done [#allocation8], 512
    $region65: #{lstm_model_forward.1} parent=1 // pred_fallthru
      _
    // Predicated region
    $region66: #{lstm_model_forward.1} parent=1 // pred_check
      _
    $region67: #{lstm_model_forward.1} parent=1 // pred_check_branch
      %126 = sbr.rel (0) target = $region69
    $region68: #{lstm_model_forward.1} parent=1 // pred_region
      %127 = dma.done [#allocation11], 512
    $region69: #{lstm_model_forward.1} parent=1 // pred_fallthru
      _
    // Predicated region
    $region70: #{lstm_model_forward.1} parent=1 // pred_check
      _
    $region71: #{lstm_model_forward.1} parent=1 // pred_check_branch
      %129 = sbr.rel (0) target = $region73
    $region72: #{lstm_model_forward.1} parent=1 // pred_region
      %130 = dma.done [#allocation11], 2048
    $region73: #{lstm_model_forward.1} parent=1 // pred_fallthru
      _
    %v131 = vld [vmem:[#allocation2] sm:$0xff]
    %v132 = vld [vmem:[#allocation4] sm:$0xff]
    %v133 = vld [vmem:[#allocation4 + $0x8] sm:$0xff]
    %v134 = vld [vmem:[%s3] sm:$0x1]
    %v136 = vlaneseq
    %v137 = vshrl.u32 %v136, 7
    %v138 = vsub.s32 0, %v137
    %v139 = vrot.slane %v134, %v138
    %vm141 = vcmask 130048
    %v143 = vsel %vm141, %v131, 0
    %145 = vmatprep.subr.mxu0 0.0
    %146 = vmatpush1.msra.mxu0 %v132
    %147 = vmatprep.subr.mxu0 0.0
    %148 = vmatpush1.msra.mxu0 %v133
    %149 = vmatprep.subr.mxu0 0.0
    %150 = vmatpush1.msra.mxu0 0.0
    %151 = vmatprep.subr.mxu0 0.0
    %152 = vmatpush1.msra.mxu0 0.0
    %153 = vmatprep.subr.mxu0 0.0
    %154 = vmatpush1.msra.mxu0 0.0
    %155 = vmatprep.subr.mxu0 0.0
    %156 = vmatpush1.msra.mxu0 0.0
    %157 = vmatprep.subr.mxu0 0.0
    %158 = vmatpush1.msra.mxu0 0.0
    %159 = vmatprep.subr.mxu0 0.0
    %160 = vmatpush1.msra.mxu0 0.0
    %161 = vmatprep.subr.mxu0 0.0
    %162 = vmatpush1.msra.mxu0 0.0
    %163 = vmatprep.subr.mxu0 0.0
    %164 = vmatpush1.msra.mxu0 0.0
    %165 = vmatprep.subr.mxu0 0.0
    %166 = vmatpush1.msra.mxu0 0.0
    %167 = vmatprep.subr.mxu0 0.0
    %168 = vmatpush1.msra.mxu0 0.0
    %169 = vmatprep.subr.mxu0 0.0
    %170 = vmatpush1.msra.mxu0 0.0
    %171 = vmatprep.subr.mxu0 0.0
    %172 = vmatpush1.msra.mxu0 0.0
    %173 = vmatprep.subr.mxu0 0.0
    %174 = vmatpush1.msra.mxu0 0.0
    %175 = vmatprep.subr.mxu0 0.0
    %176 = vmatpush1.msra.mxu0 0.0
    %177 = vmatprep.subr.mxu0 0.0
    %178 = vmatpush1.msra.mxu0 0.0
    %179 = vmatprep.subr.mxu0 0.0
    %180 = vmatpush1.msra.mxu0 0.0
    %181 = vmatprep.subr.mxu0 0.0
    %182 = vmatpush1.msra.mxu0 0.0
    %183 = vmatprep.subr.mxu0 0.0
    %184 = vmatpush1.msra.mxu0 0.0
    %185 = vmatprep.subr.mxu0 0.0
    %186 = vmatpush1.msra.mxu0 0.0
    %187 = vmatprep.subr.mxu0 0.0
    %188 = vmatpush1.msra.mxu0 0.0
    %189 = vmatprep.subr.mxu0 0.0
    %190 = vmatpush1.msra.mxu0 0.0
    %191 = vmatprep.subr.mxu0 0.0
    %192 = vmatpush1.msra.mxu0 0.0
    %193 = vmatprep.subr.mxu0 0.0
    %194 = vmatpush1.msra.mxu0 0.0
    %195 = vmatprep.subr.mxu0 0.0
    %196 = vmatpush1.msra.mxu0 0.0
    %197 = vmatprep.subr.mxu0 0.0
    %198 = vmatpush1.msra.mxu0 0.0
    %199 = vmatprep.subr.mxu0 0.0
    %200 = vmatpush1.msra.mxu0 0.0
    %201 = vmatprep.subr.mxu0 0.0
    %202 = vmatpush1.msra.mxu0 0.0
    %203 = vmatprep.subr.mxu0 0.0
    %204 = vmatpush1.msra.mxu0 0.0
    %205 = vmatprep.subr.mxu0 0.0
    %206 = vmatpush1.msra.mxu0 0.0
    %207 = vmatprep.subr.mxu0 0.0
    %208 = vmatpush1.msra.mxu0 0.0
    %209 = vmatprep.mubr.f32.mxu0 0.0
    %210 = vmatmul.mubr.f32.gmra.mrb[0].mxu0 %v143
    %v211 = vpop.f32.mrb[0].mxu0
    %v212 = vadd.f32 %v139, %v211
    %v213 = vpop.f32.mrb[0].mxu0
    %214 = vdwg.mxu0
    %v215 = vld [vmem:[#allocation6] sm:$0xff]
    %v216 = vld [vmem:[#allocation6 + $0x8] sm:$0xff]
    %v217 = vld [vmem:[#allocation6 + $0x10] sm:$0xff]
    %v218 = vld [vmem:[#allocation6 + $0x18] sm:$0xff]
    %vm219 = vcmask 261120
    %v221 = vsel %vm219, 0.0, 0
    %223 = vmatprep.subr.mxu0 0.0
    %224 = vmatpush1.msra.mxu0 %v215
    %225 = vmatprep.subr.mxu0 0.0
    %226 = vmatpush1.msra.mxu0 %v216
    %227 = vmatprep.subr.mxu0 0.0
    %228 = vmatpush1.msra.mxu0 %v217
    %229 = vmatprep.subr.mxu0 0.0
    %230 = vmatpush1.msra.mxu0 %v218
    %231 = vmatprep.subr.mxu0 0.0
    %232 = vmatpush1.msra.mxu0 0.0
    %233 = vmatprep.subr.mxu0 0.0
    %234 = vmatpush1.msra.mxu0 0.0
    %235 = vmatprep.subr.mxu0 0.0
    %236 = vmatpush1.msra.mxu0 0.0
    %237 = vmatprep.subr.mxu0 0.0
    %238 = vmatpush1.msra.mxu0 0.0
    %239 = vmatprep.subr.mxu0 0.0
    %240 = vmatpush1.msra.mxu0 0.0
    %241 = vmatprep.subr.mxu0 0.0
    %242 = vmatpush1.msra.mxu0 0.0
    %243 = vmatprep.subr.mxu0 0.0
    %244 = vmatpush1.msra.mxu0 0.0
    %245 = vmatprep.subr.mxu0 0.0
    %246 = vmatpush1.msra.mxu0 0.0
    %247 = vmatprep.subr.mxu0 0.0
    %248 = vmatpush1.msra.mxu0 0.0
    %249 = vmatprep.subr.mxu0 0.0
    %250 = vmatpush1.msra.mxu0 0.0
    %251 = vmatprep.subr.mxu0 0.0
    %252 = vmatpush1.msra.mxu0 0.0
    %253 = vmatprep.subr.mxu0 0.0
    %254 = vmatpush1.msra.mxu0 0.0
    %255 = vmatprep.subr.mxu0 0.0
    %256 = vmatpush1.msra.mxu0 0.0
    %257 = vmatprep.subr.mxu0 0.0
    %258 = vmatpush1.msra.mxu0 0.0
    %259 = vmatprep.subr.mxu0 0.0
    %260 = vmatpush1.msra.mxu0 0.0
    %261 = vmatprep.subr.mxu0 0.0
    %262 = vmatpush1.msra.mxu0 0.0
    %263 = vmatprep.subr.mxu0 0.0
    %264 = vmatpush1.msra.mxu0 0.0
    %265 = vmatprep.subr.mxu0 0.0
    %266 = vmatpush1.msra.mxu0 0.0
    %267 = vmatprep.subr.mxu0 0.0
    %268 = vmatpush1.msra.mxu0 0.0
    %269 = vmatprep.subr.mxu0 0.0
    %270 = vmatpush1.msra.mxu0 0.0
    %271 = vmatprep.subr.mxu0 0.0
    %272 = vmatpush1.msra.mxu0 0.0
    %273 = vmatprep.subr.mxu0 0.0
    %274 = vmatpush1.msra.mxu0 0.0
    %275 = vmatprep.subr.mxu0 0.0
    %276 = vmatpush1.msra.mxu0 0.0
    %277 = vmatprep.subr.mxu0 0.0
    %278 = vmatpush1.msra.mxu0 0.0
    %279 = vmatprep.subr.mxu0 0.0
    %280 = vmatpush1.msra.mxu0 0.0
    %281 = vmatprep.subr.mxu0 0.0
    %282 = vmatpush1.msra.mxu0 0.0
    %283 = vmatprep.subr.mxu0 0.0
    %284 = vmatpush1.msra.mxu0 0.0
    %285 = vmatprep.subr.mxu0 0.0
    %286 = vmatpush1.msra.mxu0 0.0
    %287 = vmatprep.mubr.f32.mxu0 0.0
    %288 = vmatmul.mubr.f32.gmra.mrb[0].mxu0 %v221
    %v289 = vpop.f32.mrb[0].mxu0
    %v290 = vadd.f32 0.0, %v289
    %v291 = vpop.f32.mrb[0].mxu0
    %292 = vdwg.mxu0
    %v293 = vadd.f32 %v212, %v290
    %v294 = vxor.u32 %v293, 2147483648
    %v295 = vmul.f32 %v294, 1.442695
    %v296 = vpow.pop %v295
    %v297 = vadd.f32 %v296, 1.0
    %v298 = vrcp.pop %v297
    %v299 = vmul.f32 1.0, %v298
    %v300 = vtanh.pop %v293
    %v301 = vmul.f32 %v299, 0.0
    %303 = vrot.lane.b32.xlu0 %v300, 64
    %v304 = vpop.permute.xlu0 %303
    %v306 = vmul.f32 %v299, %v304
    %308 = vrot.lane.b32.xlu0 %v306, 32
    %v309 = vpop.permute.xlu0 %308
    %v311 = vadd.f32 %v301, %v309
    %v312 = vtanh.pop %v311
    %314 = vrot.lane.b32.xlu0 %v312, 64
    %v315 = vpop.permute.xlu0 %314
    %v317 = vmul.f32 %v299, %v315
    %319 = vrot.lane.b32.xlu0 %v317, 32
    %v320 = vpop.permute.xlu0 %319
    %v321 = vsel %vm219, %v320, 0
    %323 = vmatprep.subr.mxu0 0.0
    %324 = vmatpush1.msra.mxu0 %v215
    %325 = vmatprep.subr.mxu0 0.0
    %326 = vmatpush1.msra.mxu0 %v216
    %327 = vmatprep.subr.mxu0 0.0
    %328 = vmatpush1.msra.mxu0 %v217
    %329 = vmatprep.subr.mxu0 0.0
    %330 = vmatpush1.msra.mxu0 %v218
    %331 = vmatprep.subr.mxu0 0.0
    %332 = vmatpush1.msra.mxu0 0.0
    %333 = vmatprep.subr.mxu0 0.0
    %334 = vmatpush1.msra.mxu0 0.0
    %335 = vmatprep.subr.mxu0 0.0
    %336 = vmatpush1.msra.mxu0 0.0
    %337 = vmatprep.subr.mxu0 0.0
    %338 = vmatpush1.msra.mxu0 0.0
    %339 = vmatprep.subr.mxu0 0.0
    %340 = vmatpush1.msra.mxu0 0.0
    %341 = vmatprep.subr.mxu0 0.0
    %342 = vmatpush1.msra.mxu0 0.0
    %343 = vmatprep.subr.mxu0 0.0
    %344 = vmatpush1.msra.mxu0 0.0
    %345 = vmatprep.subr.mxu0 0.0
    %346 = vmatpush1.msra.mxu0 0.0
    %347 = vmatprep.subr.mxu0 0.0
    %348 = vmatpush1.msra.mxu0 0.0
    %349 = vmatprep.subr.mxu0 0.0
    %350 = vmatpush1.msra.mxu0 0.0
    %351 = vmatprep.subr.mxu0 0.0
    %352 = vmatpush1.msra.mxu0 0.0
    %353 = vmatprep.subr.mxu0 0.0
    %354 = vmatpush1.msra.mxu0 0.0
    %355 = vmatprep.subr.mxu0 0.0
    %356 = vmatpush1.msra.mxu0 0.0
    %357 = vmatprep.subr.mxu0 0.0
    %358 = vmatpush1.msra.mxu0 0.0
    %359 = vmatprep.subr.mxu0 0.0
    %360 = vmatpush1.msra.mxu0 0.0
    %361 = vmatprep.subr.mxu0 0.0
    %362 = vmatpush1.msra.mxu0 0.0
    %363 = vmatprep.subr.mxu0 0.0
    %364 = vmatpush1.msra.mxu0 0.0
    %365 = vmatprep.subr.mxu0 0.0
    %366 = vmatpush1.msra.mxu0 0.0
    %367 = vmatprep.subr.mxu0 0.0
    %368 = vmatpush1.msra.mxu0 0.0
    %369 = vmatprep.subr.mxu0 0.0
    %370 = vmatpush1.msra.mxu0 0.0
    %371 = vmatprep.subr.mxu0 0.0
    %372 = vmatpush1.msra.mxu0 0.0
    %373 = vmatprep.subr.mxu0 0.0
    %374 = vmatpush1.msra.mxu0 0.0
    %375 = vmatprep.subr.mxu0 0.0
    %376 = vmatpush1.msra.mxu0 0.0
    %377 = vmatprep.subr.mxu0 0.0
    %378 = vmatpush1.msra.mxu0 0.0
    %379 = vmatprep.subr.mxu0 0.0
    %380 = vmatpush1.msra.mxu0 0.0
    %381 = vmatprep.subr.mxu0 0.0
    %382 = vmatpush1.msra.mxu0 0.0
    %383 = vmatprep.subr.mxu0 0.0
    %384 = vmatpush1.msra.mxu0 0.0
    %385 = vmatprep.subr.mxu0 0.0
    %386 = vmatpush1.msra.mxu0 0.0
    %387 = vmatprep.mubr.f32.mxu0 0.0
    %388 = vmatmul.mubr.f32.gmra.mrb[0].mxu0 %v321
    %v389 = vpop.f32.mrb[0].mxu0
    %v390 = vadd.f32 0.0, %v389
    %v391 = vpop.f32.mrb[0].mxu0
    %392 = vdwg.mxu0
    %v394 = vrot.slane %v390, 7
    %v396 = vadd.f32 %v212, %v394
    %v397 = vxor.u32 %v396, 2147483648
    %v398 = vmul.f32 %v397, 1.442695
    %v399 = vpow.pop %v398
    %v400 = vadd.f32 %v399, 1.0
    %v401 = vrcp.pop %v400
    %v402 = vmul.f32 1.0, %v401
    %v403 = vtanh.pop %v396
    %v405 = vrot.slane %v311, 7
    %v407 = vmul.f32 %v402, %v405
    %409 = vrot.lane.b32.xlu0 %v403, 64
    %v410 = vpop.permute.xlu0 %409
    %v412 = vmul.f32 %v402, %v410
    %414 = vrot.lane.b32.xlu0 %v412, 32
    %v415 = vpop.permute.xlu0 %414
    %v417 = vadd.f32 %v407, %v415
    %v418 = vtanh.pop %v417
    %420 = vrot.lane.b32.xlu0 %v418, 64
    %v421 = vpop.permute.xlu0 %420
    %v423 = vmul.f32 %v402, %v421
    %v425 = vrot.slane %v423, 1
    %426 = vrot.lane.b32.xlu0 %v425, 32
    %v427 = vpop.permute.xlu0 %426
    %v428 = vsel %vm219, %v427, 0
    %430 = vmatprep.subr.mxu0 0.0
    %431 = vmatpush1.msra.mxu0 %v215
    %432 = vmatprep.subr.mxu0 0.0
    %433 = vmatpush1.msra.mxu0 %v216
    %434 = vmatprep.subr.mxu0 0.0
    %435 = vmatpush1.msra.mxu0 %v217
    %436 = vmatprep.subr.mxu0 0.0
    %437 = vmatpush1.msra.mxu0 %v218
    %438 = vmatprep.subr.mxu0 0.0
    %439 = vmatpush1.msra.mxu0 0.0
    %440 = vmatprep.subr.mxu0 0.0
    %441 = vmatpush1.msra.mxu0 0.0
    %442 = vmatprep.subr.mxu0 0.0
    %443 = vmatpush1.msra.mxu0 0.0
    %444 = vmatprep.subr.mxu0 0.0
    %445 = vmatpush1.msra.mxu0 0.0
    %446 = vmatprep.subr.mxu0 0.0
    %447 = vmatpush1.msra.mxu0 0.0
    %448 = vmatprep.subr.mxu0 0.0
    %449 = vmatpush1.msra.mxu0 0.0
    %450 = vmatprep.subr.mxu0 0.0
    %451 = vmatpush1.msra.mxu0 0.0
    %452 = vmatprep.subr.mxu0 0.0
    %453 = vmatpush1.msra.mxu0 0.0
    %454 = vmatprep.subr.mxu0 0.0
    %455 = vmatpush1.msra.mxu0 0.0
    %456 = vmatprep.subr.mxu0 0.0
    %457 = vmatpush1.msra.mxu0 0.0
    %458 = vmatprep.subr.mxu0 0.0
    %459 = vmatpush1.msra.mxu0 0.0
    %460 = vmatprep.subr.mxu0 0.0
    %461 = vmatpush1.msra.mxu0 0.0
    %462 = vmatprep.subr.mxu0 0.0
    %463 = vmatpush1.msra.mxu0 0.0
    %464 = vmatprep.subr.mxu0 0.0
    %465 = vmatpush1.msra.mxu0 0.0
    %466 = vmatprep.subr.mxu0 0.0
    %467 = vmatpush1.msra.mxu0 0.0
    %468 = vmatprep.subr.mxu0 0.0
    %469 = vmatpush1.msra.mxu0 0.0
    %470 = vmatprep.subr.mxu0 0.0
    %471 = vmatpush1.msra.mxu0 0.0
    %472 = vmatprep.subr.mxu0 0.0
    %473 = vmatpush1.msra.mxu0 0.0
    %474 = vmatprep.subr.mxu0 0.0
    %475 = vmatpush1.msra.mxu0 0.0
    %476 = vmatprep.subr.mxu0 0.0
    %477 = vmatpush1.msra.mxu0 0.0
    %478 = vmatprep.subr.mxu0 0.0
    %479 = vmatpush1.msra.mxu0 0.0
    %480 = vmatprep.subr.mxu0 0.0
    %481 = vmatpush1.msra.mxu0 0.0
    %482 = vmatprep.subr.mxu0 0.0
    %483 = vmatpush1.msra.mxu0 0.0
    %484 = vmatprep.subr.mxu0 0.0
    %485 = vmatpush1.msra.mxu0 0.0
    %486 = vmatprep.subr.mxu0 0.0
    %487 = vmatpush1.msra.mxu0 0.0
    %488 = vmatprep.subr.mxu0 0.0
    %489 = vmatpush1.msra.mxu0 0.0
    %490 = vmatprep.subr.mxu0 0.0
    %491 = vmatpush1.msra.mxu0 0.0
    %492 = vmatprep.subr.mxu0 0.0
    %493 = vmatpush1.msra.mxu0 0.0
    %494 = vmatprep.mubr.f32.mxu0 0.0
    %495 = vmatmul.mubr.f32.gmra.mrb[0].mxu0 %v428
    %v496 = vpop.f32.mrb[0].mxu0
    %v497 = vadd.f32 0.0, %v496
    %v498 = vpop.f32.mrb[0].mxu0
    %499 = vdwg.mxu0
    %v501 = vrot.slane %v497, 6
    %v503 = vadd.f32 %v212, %v501
    %v504 = vxor.u32 %v503, 2147483648
    %v505 = vmul.f32 %v504, 1.442695
    %v506 = vpow.pop %v505
    %v507 = vadd.f32 %v506, 1.0
    %v508 = vrcp.pop %v507
    %v509 = vmul.f32 1.0, %v508
    %v510 = vtanh.pop %v503
    %v512 = vrot.slane %v417, 7
    %v514 = vmul.f32 %v509, %v512
    %516 = vrot.lane.b32.xlu0 %v510, 64
    %v517 = vpop.permute.xlu0 %516
    %v519 = vmul.f32 %v509, %v517
    %521 = vrot.lane.b32.xlu0 %v519, 32
    %v522 = vpop.permute.xlu0 %521
    %v524 = vadd.f32 %v514, %v522
    %v525 = vtanh.pop %v524
    %527 = vrot.lane.b32.xlu0 %v525, 64
    %v528 = vpop.permute.xlu0 %527
    %v530 = vmul.f32 %v509, %v528
    %v532 = vrot.slane %v530, 2
    %533 = vrot.lane.b32.xlu0 %v532, 32
    %v534 = vpop.permute.xlu0 %533
    %v535 = vsel %vm219, %v534, 0
    %537 = vmatprep.subr.mxu0 0.0
    %538 = vmatpush1.msra.mxu0 %v215
    %539 = vmatprep.subr.mxu0 0.0
    %540 = vmatpush1.msra.mxu0 %v216
    %541 = vmatprep.subr.mxu0 0.0
    %542 = vmatpush1.msra.mxu0 %v217
    %543 = vmatprep.subr.mxu0 0.0
    %544 = vmatpush1.msra.mxu0 %v218
    %545 = vmatprep.subr.mxu0 0.0
    %546 = vmatpush1.msra.mxu0 0.0
    %547 = vmatprep.subr.mxu0 0.0
    %548 = vmatpush1.msra.mxu0 0.0
    %549 = vmatprep.subr.mxu0 0.0
    %550 = vmatpush1.msra.mxu0 0.0
    %551 = vmatprep.subr.mxu0 0.0
    %552 = vmatpush1.msra.mxu0 0.0
    %553 = vmatprep.subr.mxu0 0.0
    %554 = vmatpush1.msra.mxu0 0.0
    %555 = vmatprep.subr.mxu0 0.0
    %556 = vmatpush1.msra.mxu0 0.0
    %557 = vmatprep.subr.mxu0 0.0
    %558 = vmatpush1.msra.mxu0 0.0
    %559 = vmatprep.subr.mxu0 0.0
    %560 = vmatpush1.msra.mxu0 0.0
    %561 = vmatprep.subr.mxu0 0.0
    %562 = vmatpush1.msra.mxu0 0.0
    %563 = vmatprep.subr.mxu0 0.0
    %564 = vmatpush1.msra.mxu0 0.0
    %565 = vmatprep.subr.mxu0 0.0
    %566 = vmatpush1.msra.mxu0 0.0
    %567 = vmatprep.subr.mxu0 0.0
    %568 = vmatpush1.msra.mxu0 0.0
    %569 = vmatprep.subr.mxu0 0.0
    %570 = vmatpush1.msra.mxu0 0.0
    %571 = vmatprep.subr.mxu0 0.0
    %572 = vmatpush1.msra.mxu0 0.0
    %573 = vmatprep.subr.mxu0 0.0
    %574 = vmatpush1.msra.mxu0 0.0
    %575 = vmatprep.subr.mxu0 0.0
    %576 = vmatpush1.msra.mxu0 0.0
    %577 = vmatprep.subr.mxu0 0.0
    %578 = vmatpush1.msra.mxu0 0.0
    %579 = vmatprep.subr.mxu0 0.0
    %580 = vmatpush1.msra.mxu0 0.0
    %581 = vmatprep.subr.mxu0 0.0
    %582 = vmatpush1.msra.mxu0 0.0
    %583 = vmatprep.subr.mxu0 0.0
    %584 = vmatpush1.msra.mxu0 0.0
    %585 = vmatprep.subr.mxu0 0.0
    %586 = vmatpush1.msra.mxu0 0.0
    %587 = vmatprep.subr.mxu0 0.0
    %588 = vmatpush1.msra.mxu0 0.0
    %589 = vmatprep.subr.mxu0 0.0
    %590 = vmatpush1.msra.mxu0 0.0
    %591 = vmatprep.subr.mxu0 0.0
    %592 = vmatpush1.msra.mxu0 0.0
    %593 = vmatprep.subr.mxu0 0.0
    %594 = vmatpush1.msra.mxu0 0.0
    %595 = vmatprep.subr.mxu0 0.0
    %596 = vmatpush1.msra.mxu0 0.0
    %597 = vmatprep.subr.mxu0 0.0
    %598 = vmatpush1.msra.mxu0 0.0
    %599 = vmatprep.subr.mxu0 0.0
    %600 = vmatpush1.msra.mxu0 0.0
    %601 = vmatprep.mubr.f32.mxu0 0.0
    %602 = vmatmul.mubr.f32.gmra.mrb[0].mxu0 %v535
    %v603 = vpop.f32.mrb[0].mxu0
    %v604 = vadd.f32 0.0, %v603
    %v605 = vpop.f32.mrb[0].mxu0
    %606 = vdwg.mxu0
    %v608 = vrot.slane %v604, 5
    %v610 = vadd.f32 %v212, %v608
    %v611 = vxor.u32 %v610, 2147483648
    %v612 = vmul.f32 %v611, 1.442695
    %v613 = vpow.pop %v612
    %v614 = vadd.f32 %v613, 1.0
    %v615 = vrcp.pop %v614
    %v616 = vmul.f32 1.0, %v615
    %v617 = vtanh.pop %v610
    %v619 = vrot.slane %v524, 7
    %v621 = vmul.f32 %v616, %v619
    %623 = vrot.lane.b32.xlu0 %v617, 64
    %v624 = vpop.permute.xlu0 %623
    %v626 = vmul.f32 %v616, %v624
    %628 = vrot.lane.b32.xlu0 %v626, 32
    %v629 = vpop.permute.xlu0 %628
    %v631 = vadd.f32 %v621, %v629
    %v632 = vtanh.pop %v631
    %634 = vrot.lane.b32.xlu0 %v632, 64
    %v635 = vpop.permute.xlu0 %634
    %v637 = vmul.f32 %v616, %v635
    %v639 = vrot.slane %v637, 3
    %640 = vrot.lane.b32.xlu0 %v639, 32
    %v641 = vpop.permute.xlu0 %640
    %v642 = vsel %vm219, %v641, 0
    %644 = vmatprep.subr.mxu0 0.0
    %645 = vmatpush1.msra.mxu0 %v215
    %646 = vmatprep.subr.mxu0 0.0
    %647 = vmatpush1.msra.mxu0 %v216
    %648 = vmatprep.subr.mxu0 0.0
    %649 = vmatpush1.msra.mxu0 %v217
    %650 = vmatprep.subr.mxu0 0.0
    %651 = vmatpush1.msra.mxu0 %v218
    %652 = vmatprep.subr.mxu0 0.0
    %653 = vmatpush1.msra.mxu0 0.0
    %654 = vmatprep.subr.mxu0 0.0
    %655 = vmatpush1.msra.mxu0 0.0
    %656 = vmatprep.subr.mxu0 0.0
    %657 = vmatpush1.msra.mxu0 0.0
    %658 = vmatprep.subr.mxu0 0.0
    %659 = vmatpush1.msra.mxu0 0.0
    %660 = vmatprep.subr.mxu0 0.0
    %661 = vmatpush1.msra.mxu0 0.0
    %662 = vmatprep.subr.mxu0 0.0
    %663 = vmatpush1.msra.mxu0 0.0
    %664 = vmatprep.subr.mxu0 0.0
    %665 = vmatpush1.msra.mxu0 0.0
    %666 = vmatprep.subr.mxu0 0.0
    %667 = vmatpush1.msra.mxu0 0.0
    %668 = vmatprep.subr.mxu0 0.0
    %669 = vmatpush1.msra.mxu0 0.0
    %670 = vmatprep.subr.mxu0 0.0
    %671 = vmatpush1.msra.mxu0 0.0
    %672 = vmatprep.subr.mxu0 0.0
    %673 = vmatpush1.msra.mxu0 0.0
    %674 = vmatprep.subr.mxu0 0.0
    %675 = vmatpush1.msra.mxu0 0.0
    %676 = vmatprep.subr.mxu0 0.0
    %677 = vmatpush1.msra.mxu0 0.0
    %678 = vmatprep.subr.mxu0 0.0
    %679 = vmatpush1.msra.mxu0 0.0
    %680 = vmatprep.subr.mxu0 0.0
    %681 = vmatpush1.msra.mxu0 0.0
    %682 = vmatprep.subr.mxu0 0.0
    %683 = vmatpush1.msra.mxu0 0.0
    %684 = vmatprep.subr.mxu0 0.0
    %685 = vmatpush1.msra.mxu0 0.0
    %686 = vmatprep.subr.mxu0 0.0
    %687 = vmatpush1.msra.mxu0 0.0
    %688 = vmatprep.subr.mxu0 0.0
    %689 = vmatpush1.msra.mxu0 0.0
    %690 = vmatprep.subr.mxu0 0.0
    %691 = vmatpush1.msra.mxu0 0.0
    %692 = vmatprep.subr.mxu0 0.0
    %693 = vmatpush1.msra.mxu0 0.0
    %694 = vmatprep.subr.mxu0 0.0
    %695 = vmatpush1.msra.mxu0 0.0
    %696 = vmatprep.subr.mxu0 0.0
    %697 = vmatpush1.msra.mxu0 0.0
    %698 = vmatprep.subr.mxu0 0.0
    %699 = vmatpush1.msra.mxu0 0.0
    %700 = vmatprep.subr.mxu0 0.0
    %701 = vmatpush1.msra.mxu0 0.0
    %702 = vmatprep.subr.mxu0 0.0
    %703 = vmatpush1.msra.mxu0 0.0
    %704 = vmatprep.subr.mxu0 0.0
    %705 = vmatpush1.msra.mxu0 0.0
    %706 = vmatprep.subr.mxu0 0.0
    %707 = vmatpush1.msra.mxu0 0.0
    %708 = vmatprep.mubr.f32.mxu0 0.0
    %709 = vmatmul.mubr.f32.gmra.mrb[0].mxu0 %v642
    %v710 = vpop.f32.mrb[0].mxu0
    %v711 = vadd.f32 0.0, %v710
    %v712 = vpop.f32.mrb[0].mxu0
    %713 = vdwg.mxu0
    %v715 = vrot.slane %v711, 4
    %v717 = vadd.f32 %v212, %v715
    %v718 = vxor.u32 %v717, 2147483648
    %v719 = vmul.f32 %v718, 1.442695
    %v720 = vpow.pop %v719
    %v721 = vadd.f32 %v720, 1.0
    %v722 = vrcp.pop %v721
    %v723 = vmul.f32 1.0, %v722
    %v724 = vtanh.pop %v717
    %v726 = vrot.slane %v631, 7
    %v728 = vmul.f32 %v723, %v726
    %730 = vrot.lane.b32.xlu0 %v724, 64
    %v731 = vpop.permute.xlu0 %730
    %v733 = vmul.f32 %v723, %v731
    %735 = vrot.lane.b32.xlu0 %v733, 32
    %v736 = vpop.permute.xlu0 %735
    %v738 = vadd.f32 %v728, %v736
    %v739 = vtanh.pop %v738
    %741 = vrot.lane.b32.xlu0 %v739, 64
    %v742 = vpop.permute.xlu0 %741
    %v744 = vmul.f32 %v723, %v742
    %v746 = vrot.slane %v744, 4
    %747 = vrot.lane.b32.xlu0 %v746, 32
    %v748 = vpop.permute.xlu0 %747
    %v749 = vsel %vm219, %v748, 0
    %751 = vmatprep.subr.mxu0 0.0
    %752 = vmatpush1.msra.mxu0 %v215
    %753 = vmatprep.subr.mxu0 0.0
    %754 = vmatpush1.msra.mxu0 %v216
    %755 = vmatprep.subr.mxu0 0.0
    %756 = vmatpush1.msra.mxu0 %v217
    %757 = vmatprep.subr.mxu0 0.0
    %758 = vmatpush1.msra.mxu0 %v218
    %759 = vmatprep.subr.mxu0 0.0
    %760 = vmatpush1.msra.mxu0 0.0
    %761 = vmatprep.subr.mxu0 0.0
    %762 = vmatpush1.msra.mxu0 0.0
    %763 = vmatprep.subr.mxu0 0.0
    %764 = vmatpush1.msra.mxu0 0.0
    %765 = vmatprep.subr.mxu0 0.0
    %766 = vmatpush1.msra.mxu0 0.0
    %767 = vmatprep.subr.mxu0 0.0
    %768 = vmatpush1.msra.mxu0 0.0
    %769 = vmatprep.subr.mxu0 0.0
    %770 = vmatpush1.msra.mxu0 0.0
    %771 = vmatprep.subr.mxu0 0.0
    %772 = vmatpush1.msra.mxu0 0.0
    %773 = vmatprep.subr.mxu0 0.0
    %774 = vmatpush1.msra.mxu0 0.0
    %775 = vmatprep.subr.mxu0 0.0
    %776 = vmatpush1.msra.mxu0 0.0
    %777 = vmatprep.subr.mxu0 0.0
    %778 = vmatpush1.msra.mxu0 0.0
    %779 = vmatprep.subr.mxu0 0.0
    %780 = vmatpush1.msra.mxu0 0.0
    %781 = vmatprep.subr.mxu0 0.0
    %782 = vmatpush1.msra.mxu0 0.0
    %783 = vmatprep.subr.mxu0 0.0
    %784 = vmatpush1.msra.mxu0 0.0
    %785 = vmatprep.subr.mxu0 0.0
    %786 = vmatpush1.msra.mxu0 0.0
    %787 = vmatprep.subr.mxu0 0.0
    %788 = vmatpush1.msra.mxu0 0.0
    %789 = vmatprep.subr.mxu0 0.0
    %790 = vmatpush1.msra.mxu0 0.0
    %791 = vmatprep.subr.mxu0 0.0
    %792 = vmatpush1.msra.mxu0 0.0
    %793 = vmatprep.subr.mxu0 0.0
    %794 = vmatpush1.msra.mxu0 0.0
    %795 = vmatprep.subr.mxu0 0.0
    %796 = vmatpush1.msra.mxu0 0.0
    %797 = vmatprep.subr.mxu0 0.0
    %798 = vmatpush1.msra.mxu0 0.0
    %799 = vmatprep.subr.mxu0 0.0
    %800 = vmatpush1.msra.mxu0 0.0
    %801 = vmatprep.subr.mxu0 0.0
    %802 = vmatpush1.msra.mxu0 0.0
    %803 = vmatprep.subr.mxu0 0.0
    %804 = vmatpush1.msra.mxu0 0.0
    %805 = vmatprep.subr.mxu0 0.0
    %806 = vmatpush1.msra.mxu0 0.0
    %807 = vmatprep.subr.mxu0 0.0
    %808 = vmatpush1.msra.mxu0 0.0
    %809 = vmatprep.subr.mxu0 0.0
    %810 = vmatpush1.msra.mxu0 0.0
    %811 = vmatprep.subr.mxu0 0.0
    %812 = vmatpush1.msra.mxu0 0.0
    %813 = vmatprep.subr.mxu0 0.0
    %814 = vmatpush1.msra.mxu0 0.0
    %815 = vmatprep.mubr.f32.mxu0 0.0
    %816 = vmatmul.mubr.f32.gmra.mrb[0].mxu0 %v749
    %v817 = vpop.f32.mrb[0].mxu0
    %v818 = vadd.f32 0.0, %v817
    %v819 = vpop.f32.mrb[0].mxu0
    %820 = vdwg.mxu0
    %v822 = vrot.slane %v818, 3
    %v824 = vadd.f32 %v212, %v822
    %v825 = vxor.u32 %v824, 2147483648
    %v826 = vmul.f32 %v825, 1.442695
    %v827 = vpow.pop %v826
    %v828 = vadd.f32 %v827, 1.0
    %v829 = vrcp.pop %v828
    %v830 = vmul.f32 1.0, %v829
    %v831 = vtanh.pop %v824
    %v833 = vrot.slane %v738, 7
    %v835 = vmul.f32 %v830, %v833
    %837 = vrot.lane.b32.xlu0 %v831, 64
    %v838 = vpop.permute.xlu0 %837
    %v840 = vmul.f32 %v830, %v838
    %842 = vrot.lane.b32.xlu0 %v840, 32
    %v843 = vpop.permute.xlu0 %842
    %v845 = vadd.f32 %v835, %v843
    %v846 = vtanh.pop %v845
    %848 = vrot.lane.b32.xlu0 %v846, 64
    %v849 = vpop.permute.xlu0 %848
    %v851 = vmul.f32 %v830, %v849
    %v853 = vrot.slane %v851, 5
    %854 = vrot.lane.b32.xlu0 %v853, 32
    %v855 = vpop.permute.xlu0 %854
    %v856 = vsel %vm219, %v855, 0
    %858 = vmatprep.subr.mxu0 0.0
    %859 = vmatpush1.msra.mxu0 %v215
    %860 = vmatprep.subr.mxu0 0.0
    %861 = vmatpush1.msra.mxu0 %v216
    %862 = vmatprep.subr.mxu0 0.0
    %863 = vmatpush1.msra.mxu0 %v217
    %864 = vmatprep.subr.mxu0 0.0
    %865 = vmatpush1.msra.mxu0 %v218
    %866 = vmatprep.subr.mxu0 0.0
    %867 = vmatpush1.msra.mxu0 0.0
    %868 = vmatprep.subr.mxu0 0.0
    %869 = vmatpush1.msra.mxu0 0.0
    %870 = vmatprep.subr.mxu0 0.0
    %871 = vmatpush1.msra.mxu0 0.0
    %872 = vmatprep.subr.mxu0 0.0
    %873 = vmatpush1.msra.mxu0 0.0
    %874 = vmatprep.subr.mxu0 0.0
    %875 = vmatpush1.msra.mxu0 0.0
    %876 = vmatprep.subr.mxu0 0.0
    %877 = vmatpush1.msra.mxu0 0.0
    %878 = vmatprep.subr.mxu0 0.0
    %879 = vmatpush1.msra.mxu0 0.0
    %880 = vmatprep.subr.mxu0 0.0
    %881 = vmatpush1.msra.mxu0 0.0
    %882 = vmatprep.subr.mxu0 0.0
    %883 = vmatpush1.msra.mxu0 0.0
    %884 = vmatprep.subr.mxu0 0.0
    %885 = vmatpush1.msra.mxu0 0.0
    %886 = vmatprep.subr.mxu0 0.0
    %887 = vmatpush1.msra.mxu0 0.0
    %888 = vmatprep.subr.mxu0 0.0
    %889 = vmatpush1.msra.mxu0 0.0
    %890 = vmatprep.subr.mxu0 0.0
    %891 = vmatpush1.msra.mxu0 0.0
    %892 = vmatprep.subr.mxu0 0.0
    %893 = vmatpush1.msra.mxu0 0.0
    %894 = vmatprep.subr.mxu0 0.0
    %895 = vmatpush1.msra.mxu0 0.0
    %896 = vmatprep.subr.mxu0 0.0
    %897 = vmatpush1.msra.mxu0 0.0
    %898 = vmatprep.subr.mxu0 0.0
    %899 = vmatpush1.msra.mxu0 0.0
    %900 = vmatprep.subr.mxu0 0.0
    %901 = vmatpush1.msra.mxu0 0.0
    %902 = vmatprep.subr.mxu0 0.0
    %903 = vmatpush1.msra.mxu0 0.0
    %904 = vmatprep.subr.mxu0 0.0
    %905 = vmatpush1.msra.mxu0 0.0
    %906 = vmatprep.subr.mxu0 0.0
    %907 = vmatpush1.msra.mxu0 0.0
    %908 = vmatprep.subr.mxu0 0.0
    %909 = vmatpush1.msra.mxu0 0.0
    %910 = vmatprep.subr.mxu0 0.0
    %911 = vmatpush1.msra.mxu0 0.0
    %912 = vmatprep.subr.mxu0 0.0
    %913 = vmatpush1.msra.mxu0 0.0
    %914 = vmatprep.subr.mxu0 0.0
    %915 = vmatpush1.msra.mxu0 0.0
    %916 = vmatprep.subr.mxu0 0.0
    %917 = vmatpush1.msra.mxu0 0.0
    %918 = vmatprep.subr.mxu0 0.0
    %919 = vmatpush1.msra.mxu0 0.0
    %920 = vmatprep.subr.mxu0 0.0
    %921 = vmatpush1.msra.mxu0 0.0
    %922 = vmatprep.mubr.f32.mxu0 0.0
    %923 = vmatmul.mubr.f32.gmra.mrb[0].mxu0 %v856
    %v924 = vpop.f32.mrb[0].mxu0
    %v925 = vadd.f32 0.0, %v924
    %v926 = vpop.f32.mrb[0].mxu0
    %927 = vdwg.mxu0
    %v929 = vrot.slane %v925, 2
    %v931 = vadd.f32 %v212, %v929
    %v932 = vxor.u32 %v931, 2147483648
    %v933 = vmul.f32 %v932, 1.442695
    %v934 = vpow.pop %v933
    %v935 = vadd.f32 %v934, 1.0
    %v936 = vrcp.pop %v935
    %v937 = vmul.f32 1.0, %v936
    %v938 = vtanh.pop %v931
    %v940 = vrot.slane %v845, 7
    %v942 = vmul.f32 %v937, %v940
    %944 = vrot.lane.b32.xlu0 %v938, 64
    %v945 = vpop.permute.xlu0 %944
    %v947 = vmul.f32 %v937, %v945
    %949 = vrot.lane.b32.xlu0 %v947, 32
    %v950 = vpop.permute.xlu0 %949
    %v952 = vadd.f32 %v942, %v950
    %v953 = vtanh.pop %v952
    %955 = vrot.lane.b32.xlu0 %v953, 64
    %v956 = vpop.permute.xlu0 %955
    %v958 = vmul.f32 %v937, %v956
    %v960 = vrot.slane %v958, 6
    %961 = vrot.lane.b32.xlu0 %v960, 32
    %v962 = vpop.permute.xlu0 %961
    %v963 = vsel %vm219, %v962, 0
    %965 = vmatprep.subr.mxu0 0.0
    %966 = vmatpush1.msra.mxu0 %v215
    %967 = vmatprep.subr.mxu0 0.0
    %968 = vmatpush1.msra.mxu0 %v216
    %969 = vmatprep.subr.mxu0 0.0
    %970 = vmatpush1.msra.mxu0 %v217
    %971 = vmatprep.subr.mxu0 0.0
    %972 = vmatpush1.msra.mxu0 %v218
    %973 = vmatprep.subr.mxu0 0.0
    %974 = vmatpush1.msra.mxu0 0.0
    %975 = vmatprep.subr.mxu0 0.0
    %976 = vmatpush1.msra.mxu0 0.0
    %977 = vmatprep.subr.mxu0 0.0
    %978 = vmatpush1.msra.mxu0 0.0
    %979 = vmatprep.subr.mxu0 0.0
    %980 = vmatpush1.msra.mxu0 0.0
    %981 = vmatprep.subr.mxu0 0.0
    %982 = vmatpush1.msra.mxu0 0.0
    %983 = vmatprep.subr.mxu0 0.0
    %984 = vmatpush1.msra.mxu0 0.0
    %985 = vmatprep.subr.mxu0 0.0
    %986 = vmatpush1.msra.mxu0 0.0
    %987 = vmatprep.subr.mxu0 0.0
    %988 = vmatpush1.msra.mxu0 0.0
    %989 = vmatprep.subr.mxu0 0.0
    %990 = vmatpush1.msra.mxu0 0.0
    %991 = vmatprep.subr.mxu0 0.0
    %992 = vmatpush1.msra.mxu0 0.0
    %993 = vmatprep.subr.mxu0 0.0
    %994 = vmatpush1.msra.mxu0 0.0
    %995 = vmatprep.subr.mxu0 0.0
    %996 = vmatpush1.msra.mxu0 0.0
    %997 = vmatprep.subr.mxu0 0.0
    %998 = vmatpush1.msra.mxu0 0.0
    %999 = vmatprep.subr.mxu0 0.0
    %1000 = vmatpush1.msra.mxu0 0.0
    %1001 = vmatprep.subr.mxu0 0.0
    %1002 = vmatpush1.msra.mxu0 0.0
    %1003 = vmatprep.subr.mxu0 0.0
    %1004 = vmatpush1.msra.mxu0 0.0
    %1005 = vmatprep.subr.mxu0 0.0
    %1006 = vmatpush1.msra.mxu0 0.0
    %1007 = vmatprep.subr.mxu0 0.0
    %1008 = vmatpush1.msra.mxu0 0.0
    %1009 = vmatprep.subr.mxu0 0.0
    %1010 = vmatpush1.msra.mxu0 0.0
    %1011 = vmatprep.subr.mxu0 0.0
    %1012 = vmatpush1.msra.mxu0 0.0
    %1013 = vmatprep.subr.mxu0 0.0
    %1014 = vmatpush1.msra.mxu0 0.0
    %1015 = vmatprep.subr.mxu0 0.0
    %1016 = vmatpush1.msra.mxu0 0.0
    %1017 = vmatprep.subr.mxu0 0.0
    %1018 = vmatpush1.msra.mxu0 0.0
    %1019 = vmatprep.subr.mxu0 0.0
    %1020 = vmatpush1.msra.mxu0 0.0
    %1021 = vmatprep.subr.mxu0 0.0
    %1022 = vmatpush1.msra.mxu0 0.0
    %1023 = vmatprep.subr.mxu0 0.0
    %1024 = vmatpush1.msra.mxu0 0.0
    %1025 = vmatprep.subr.mxu0 0.0
    %1026 = vmatpush1.msra.mxu0 0.0
    %1027 = vmatprep.subr.mxu0 0.0
    %1028 = vmatpush1.msra.mxu0 0.0
    %1029 = vmatprep.mubr.f32.mxu0 0.0
    %1030 = vmatmul.mubr.f32.gmra.mrb[0].mxu0 %v963
    %v1031 = vpop.f32.mrb[0].mxu0
    %v1032 = vadd.f32 0.0, %v1031
    %v1033 = vpop.f32.mrb[0].mxu0
    %1034 = vdwg.mxu0
    %v1036 = vrot.slane %v1032, 1
    %v1038 = vadd.f32 %v212, %v1036
    %v1039 = vxor.u32 %v1038, 2147483648
    %v1040 = vmul.f32 %v1039, 1.442695
    %v1041 = vpow.pop %v1040
    %v1042 = vadd.f32 %v1041, 1.0
    %v1043 = vrcp.pop %v1042
    %v1044 = vmul.f32 1.0, %v1043
    %v1045 = vtanh.pop %v1038
    %v1047 = vrot.slane %v952, 7
    %v1049 = vmul.f32 %v1044, %v1047
    %1051 = vrot.lane.b32.xlu0 %v1045, 64
    %v1052 = vpop.permute.xlu0 %1051
    %v1054 = vmul.f32 %v1044, %v1052
    %1056 = vrot.lane.b32.xlu0 %v1054, 32
    %v1057 = vpop.permute.xlu0 %1056
    %v1059 = vadd.f32 %v1049, %v1057
    %v1060 = vtanh.pop %v1059
    %1062 = vrot.lane.b32.xlu0 %v1060, 64
    %v1063 = vpop.permute.xlu0 %1062
    %v1065 = vmul.f32 %v1044, %v1063
    %vm1066 = vcmask 1040384
    %v1067 = vsel %vm1066, %v317, %v423
    %vm1068 = vcmask 1041408
    %v1069 = vsel %vm1068, %v1067, %v530
    %vm1070 = vcmask 1042432
    %v1071 = vsel %vm1070, %v1069, %v637
    %vm1072 = vcmask 1043456
    %v1073 = vsel %vm1072, %v1071, %v744
    %vm1074 = vcmask 1044480
    %v1075 = vsel %vm1074, %v1073, %v851
    %vm1076 = vcmask 1045504
    %v1077 = vsel %vm1076, %v1075, %v958
    %vm1078 = vcmask 1046528
    %v1079 = vsel %vm1078, %v1077, %v1065
    %v1080 = vld [vmem:[#allocation7] sm:$0xff]
    %v1081 = vld [vmem:[#allocation7 + $0x8] sm:$0xff]
    %v1082 = vld [vmem:[#allocation7 + $0x10] sm:$0xff]
    %v1083 = vld [vmem:[#allocation7 + $0x18] sm:$0xff]
    %v1084 = vld [vmem:[%s6] sm:$0x1]
    %v1086 = vlaneseq
    %v1087 = vshrl.u32 %v1086, 7
    %v1088 = vsub.s32 0, %v1087
    %v1089 = vrot.slane %v1084, %v1088
    %1092 = vrot.lane.b32.xlu0 %v1079, 32
    %v1093 = vpop.permute.xlu0 %1092
    %v1094 = vsel %vm219, %v1093, 0
    %1096 = vmatprep.subr.mxu0 0.0
    %1097 = vmatpush1.msra.mxu0 %v1080
    %1098 = vmatprep.subr.mxu0 0.0
    %1099 = vmatpush1.msra.mxu0 %v1081
    %1100 = vmatprep.subr.mxu0 0.0
    %1101 = vmatpush1.msra.mxu0 %v1082
    %1102 = vmatprep.subr.mxu0 0.0
    %1103 = vmatpush1.msra.mxu0 %v1083
    %1104 = vmatprep.subr.mxu0 0.0
    %1105 = vmatpush1.msra.mxu0 0.0
    %1106 = vmatprep.subr.mxu0 0.0
    %1107 = vmatpush1.msra.mxu0 0.0
    %1108 = vmatprep.subr.mxu0 0.0
    %1109 = vmatpush1.msra.mxu0 0.0
    %1110 = vmatprep.subr.mxu0 0.0
    %1111 = vmatpush1.msra.mxu0 0.0
    %1112 = vmatprep.subr.mxu0 0.0
    %1113 = vmatpush1.msra.mxu0 0.0
    %1114 = vmatprep.subr.mxu0 0.0
    %1115 = vmatpush1.msra.mxu0 0.0
    %1116 = vmatprep.subr.mxu0 0.0
    %1117 = vmatpush1.msra.mxu0 0.0
    %1118 = vmatprep.subr.mxu0 0.0
    %1119 = vmatpush1.msra.mxu0 0.0
    %1120 = vmatprep.subr.mxu0 0.0
    %1121 = vmatpush1.msra.mxu0 0.0
    %1122 = vmatprep.subr.mxu0 0.0
    %1123 = vmatpush1.msra.mxu0 0.0
    %1124 = vmatprep.subr.mxu0 0.0
    %1125 = vmatpush1.msra.mxu0 0.0
    %1126 = vmatprep.subr.mxu0 0.0
    %1127 = vmatpush1.msra.mxu0 0.0
    %1128 = vmatprep.subr.mxu0 0.0
    %1129 = vmatpush1.msra.mxu0 0.0
    %1130 = vmatprep.subr.mxu0 0.0
    %1131 = vmatpush1.msra.mxu0 0.0
    %1132 = vmatprep.subr.mxu0 0.0
    %1133 = vmatpush1.msra.mxu0 0.0
    %1134 = vmatprep.subr.mxu0 0.0
    %1135 = vmatpush1.msra.mxu0 0.0
    %1136 = vmatprep.subr.mxu0 0.0
    %1137 = vmatpush1.msra.mxu0 0.0
    %1138 = vmatprep.subr.mxu0 0.0
    %1139 = vmatpush1.msra.mxu0 0.0
    %1140 = vmatprep.subr.mxu0 0.0
    %1141 = vmatpush1.msra.mxu0 0.0
    %1142 = vmatprep.subr.mxu0 0.0
    %1143 = vmatpush1.msra.mxu0 0.0
    %1144 = vmatprep.subr.mxu0 0.0
    %1145 = vmatpush1.msra.mxu0 0.0
    %1146 = vmatprep.subr.mxu0 0.0
    %1147 = vmatpush1.msra.mxu0 0.0
    %1148 = vmatprep.subr.mxu0 0.0
    %1149 = vmatpush1.msra.mxu0 0.0
    %1150 = vmatprep.subr.mxu0 0.0
    %1151 = vmatpush1.msra.mxu0 0.0
    %1152 = vmatprep.subr.mxu0 0.0
    %1153 = vmatpush1.msra.mxu0 0.0
    %1154 = vmatprep.subr.mxu0 0.0
    %1155 = vmatpush1.msra.mxu0 0.0
    %1156 = vmatprep.subr.mxu0 0.0
    %1157 = vmatpush1.msra.mxu0 0.0
    %1158 = vmatprep.subr.mxu0 0.0
    %1159 = vmatpush1.msra.mxu0 0.0
    %1160 = vmatprep.mubr.f32.mxu0 0.0
    %1161 = vmatmul.mubr.f32.gmra.mrb[0].mxu0 %v1094
    %v1162 = vpop.f32.mrb[0].mxu0
    %v1163 = vadd.f32 %v1089, %v1162
    %v1164 = vpop.f32.mrb[0].mxu0
    %1165 = vdwg.mxu0
    %v1166 = vld [vmem:[#allocation9] sm:$0xff]
    %v1167 = vld [vmem:[#allocation9 + $0x8] sm:$0xff]
    %v1168 = vld [vmem:[#allocation9 + $0x10] sm:$0xff]
    %v1169 = vld [vmem:[#allocation9 + $0x18] sm:$0xff]
    %1170 = vmatprep.subr.mxu0 0.0
    %1171 = vmatpush1.msra.mxu0 %v1166
    %1172 = vmatprep.subr.mxu0 0.0
    %1173 = vmatpush1.msra.mxu0 %v1167
    %1174 = vmatprep.subr.mxu0 0.0
    %1175 = vmatpush1.msra.mxu0 %v1168
    %1176 = vmatprep.subr.mxu0 0.0
    %1177 = vmatpush1.msra.mxu0 %v1169
    %1178 = vmatprep.subr.mxu0 0.0
    %1179 = vmatpush1.msra.mxu0 0.0
    %1180 = vmatprep.subr.mxu0 0.0
    %1181 = vmatpush1.msra.mxu0 0.0
    %1182 = vmatprep.subr.mxu0 0.0
    %1183 = vmatpush1.msra.mxu0 0.0
    %1184 = vmatprep.subr.mxu0 0.0
    %1185 = vmatpush1.msra.mxu0 0.0
    %1186 = vmatprep.subr.mxu0 0.0
    %1187 = vmatpush1.msra.mxu0 0.0
    %1188 = vmatprep.subr.mxu0 0.0
    %1189 = vmatpush1.msra.mxu0 0.0
    %1190 = vmatprep.subr.mxu0 0.0
    %1191 = vmatpush1.msra.mxu0 0.0
    %1192 = vmatprep.subr.mxu0 0.0
    %1193 = vmatpush1.msra.mxu0 0.0
    %1194 = vmatprep.subr.mxu0 0.0
    %1195 = vmatpush1.msra.mxu0 0.0
    %1196 = vmatprep.subr.mxu0 0.0
    %1197 = vmatpush1.msra.mxu0 0.0
    %1198 = vmatprep.subr.mxu0 0.0
    %1199 = vmatpush1.msra.mxu0 0.0
    %1200 = vmatprep.subr.mxu0 0.0
    %1201 = vmatpush1.msra.mxu0 0.0
    %1202 = vmatprep.subr.mxu0 0.0
    %1203 = vmatpush1.msra.mxu0 0.0
    %1204 = vmatprep.subr.mxu0 0.0
    %1205 = vmatpush1.msra.mxu0 0.0
    %1206 = vmatprep.subr.mxu0 0.0
    %1207 = vmatpush1.msra.mxu0 0.0
    %1208 = vmatprep.subr.mxu0 0.0
    %1209 = vmatpush1.msra.mxu0 0.0
    %1210 = vmatprep.subr.mxu0 0.0
    %1211 = vmatpush1.msra.mxu0 0.0
    %1212 = vmatprep.subr.mxu0 0.0
    %1213 = vmatpush1.msra.mxu0 0.0
    %1214 = vmatprep.subr.mxu0 0.0
    %1215 = vmatpush1.msra.mxu0 0.0
    %1216 = vmatprep.subr.mxu0 0.0
    %1217 = vmatpush1.msra.mxu0 0.0
    %1218 = vmatprep.subr.mxu0 0.0
    %1219 = vmatpush1.msra.mxu0 0.0
    %1220 = vmatprep.subr.mxu0 0.0
    %1221 = vmatpush1.msra.mxu0 0.0
    %1222 = vmatprep.subr.mxu0 0.0
    %1223 = vmatpush1.msra.mxu0 0.0
    %1224 = vmatprep.subr.mxu0 0.0
    %1225 = vmatpush1.msra.mxu0 0.0
    %1226 = vmatprep.subr.mxu0 0.0
    %1227 = vmatpush1.msra.mxu0 0.0
    %1228 = vmatprep.subr.mxu0 0.0
    %1229 = vmatpush1.msra.mxu0 0.0
    %1230 = vmatprep.subr.mxu0 0.0
    %1231 = vmatpush1.msra.mxu0 0.0
    %1232 = vmatprep.subr.mxu0 0.0
    %1233 = vmatpush1.msra.mxu0 0.0
    %1234 = vmatprep.mubr.f32.mxu0 0.0
    %1235 = vmatmul.mubr.f32.gmra.mrb[0].mxu0 %v221
    %v1236 = vpop.f32.mrb[0].mxu0
    %v1237 = vadd.f32 0.0, %v1236
    %v1238 = vpop.f32.mrb[0].mxu0
    %1239 = vdwg.mxu0
    %v1240 = vadd.f32 %v1163, %v1237
    %v1241 = vxor.u32 %v1240, 2147483648
    %v1242 = vmul.f32 %v1241, 1.442695
    %v1243 = vpow.pop %v1242
    %v1244 = vadd.f32 %v1243, 1.0
    %v1245 = vrcp.pop %v1244
    %v1246 = vmul.f32 1.0, %v1245
    %v1247 = vtanh.pop %v1240
    %v1248 = vmul.f32 %v1246, 0.0
    %1250 = vrot.lane.b32.xlu0 %v1247, 64
    %v1251 = vpop.permute.xlu0 %1250
    %v1253 = vmul.f32 %v1246, %v1251
    %1255 = vrot.lane.b32.xlu0 %v1253, 32
    %v1256 = vpop.permute.xlu0 %1255
    %v1258 = vadd.f32 %v1248, %v1256
    %v1259 = vtanh.pop %v1258
    %1261 = vrot.lane.b32.xlu0 %v1259, 64
    %v1262 = vpop.permute.xlu0 %1261
    %v1264 = vmul.f32 %v1246, %v1262
    %1266 = vrot.lane.b32.xlu0 %v1264, 32
    %v1267 = vpop.permute.xlu0 %1266
    %v1268 = vsel %vm219, %v1267, 0
    %1270 = vmatprep.subr.mxu0 0.0
    %1271 = vmatpush1.msra.mxu0 %v1166
    %1272 = vmatprep.subr.mxu0 0.0
    %1273 = vmatpush1.msra.mxu0 %v1167
    %1274 = vmatprep.subr.mxu0 0.0
    %1275 = vmatpush1.msra.mxu0 %v1168
    %1276 = vmatprep.subr.mxu0 0.0
    %1277 = vmatpush1.msra.mxu0 %v1169
    %1278 = vmatprep.subr.mxu0 0.0
    %1279 = vmatpush1.msra.mxu0 0.0
    %1280 = vmatprep.subr.mxu0 0.0
    %1281 = vmatpush1.msra.mxu0 0.0
    %1282 = vmatprep.subr.mxu0 0.0
    %1283 = vmatpush1.msra.mxu0 0.0
    %1284 = vmatprep.subr.mxu0 0.0
    %1285 = vmatpush1.msra.mxu0 0.0
    %1286 = vmatprep.subr.mxu0 0.0
    %1287 = vmatpush1.msra.mxu0 0.0
    %1288 = vmatprep.subr.mxu0 0.0
    %1289 = vmatpush1.msra.mxu0 0.0
    %1290 = vmatprep.subr.mxu0 0.0
    %1291 = vmatpush1.msra.mxu0 0.0
    %1292 = vmatprep.subr.mxu0 0.0
    %1293 = vmatpush1.msra.mxu0 0.0
    %1294 = vmatprep.subr.mxu0 0.0
    %1295 = vmatpush1.msra.mxu0 0.0
    %1296 = vmatprep.subr.mxu0 0.0
    %1297 = vmatpush1.msra.mxu0 0.0
    %1298 = vmatprep.subr.mxu0 0.0
    %1299 = vmatpush1.msra.mxu0 0.0
    %1300 = vmatprep.subr.mxu0 0.0
    %1301 = vmatpush1.msra.mxu0 0.0
    %1302 = vmatprep.subr.mxu0 0.0
    %1303 = vmatpush1.msra.mxu0 0.0
    %1304 = vmatprep.subr.mxu0 0.0
    %1305 = vmatpush1.msra.mxu0 0.0
    %1306 = vmatprep.subr.mxu0 0.0
    %1307 = vmatpush1.msra.mxu0 0.0
    %1308 = vmatprep.subr.mxu0 0.0
    %1309 = vmatpush1.msra.mxu0 0.0
    %1310 = vmatprep.subr.mxu0 0.0
    %1311 = vmatpush1.msra.mxu0 0.0
    %1312 = vmatprep.subr.mxu0 0.0
    %1313 = vmatpush1.msra.mxu0 0.0
    %1314 = vmatprep.subr.mxu0 0.0
    %1315 = vmatpush1.msra.mxu0 0.0
    %1316 = vmatprep.subr.mxu0 0.0
    %1317 = vmatpush1.msra.mxu0 0.0
    %1318 = vmatprep.subr.mxu0 0.0
    %1319 = vmatpush1.msra.mxu0 0.0
    %1320 = vmatprep.subr.mxu0 0.0
    %1321 = vmatpush1.msra.mxu0 0.0
    %1322 = vmatprep.subr.mxu0 0.0
    %1323 = vmatpush1.msra.mxu0 0.0
    %1324 = vmatprep.subr.mxu0 0.0
    %1325 = vmatpush1.msra.mxu0 0.0
    %1326 = vmatprep.subr.mxu0 0.0
    %1327 = vmatpush1.msra.mxu0 0.0
    %1328 = vmatprep.subr.mxu0 0.0
    %1329 = vmatpush1.msra.mxu0 0.0
    %1330 = vmatprep.subr.mxu0 0.0
    %1331 = vmatpush1.msra.mxu0 0.0
    %1332 = vmatprep.subr.mxu0 0.0
    %1333 = vmatpush1.msra.mxu0 0.0
    %1334 = vmatprep.mubr.f32.mxu0 0.0
    %1335 = vmatmul.mubr.f32.gmra.mrb[0].mxu0 %v1268
    %v1336 = vpop.f32.mrb[0].mxu0
    %v1337 = vadd.f32 0.0, %v1336
    %v1338 = vpop.f32.mrb[0].mxu0
    %1339 = vdwg.mxu0
    %v1341 = vrot.slane %v1337, 7
    %v1343 = vadd.f32 %v1163, %v1341
    %v1344 = vxor.u32 %v1343, 2147483648
    %v1345 = vmul.f32 %v1344, 1.442695
    %v1346 = vpow.pop %v1345
    %v1347 = vadd.f32 %v1346, 1.0
    %v1348 = vrcp.pop %v1347
    %v1349 = vmul.f32 1.0, %v1348
    %v1350 = vtanh.pop %v1343
    %v1352 = vrot.slane %v1258, 7
    %v1354 = vmul.f32 %v1349, %v1352
    %1356 = vrot.lane.b32.xlu0 %v1350, 64
    %v1357 = vpop.permute.xlu0 %1356
    %v1359 = vmul.f32 %v1349, %v1357
    %1361 = vrot.lane.b32.xlu0 %v1359, 32
    %v1362 = vpop.permute.xlu0 %1361
    %v1364 = vadd.f32 %v1354, %v1362
    %v1365 = vtanh.pop %v1364
    %1367 = vrot.lane.b32.xlu0 %v1365, 64
    %v1368 = vpop.permute.xlu0 %1367
    %v1370 = vmul.f32 %v1349, %v1368
    %v1372 = vrot.slane %v1370, 1
    %1373 = vrot.lane.b32.xlu0 %v1372, 32
    %v1374 = vpop.permute.xlu0 %1373
    %v1375 = vsel %vm219, %v1374, 0
    %1377 = vmatprep.subr.mxu0 0.0
    %1378 = vmatpush1.msra.mxu0 %v1166
    %1379 = vmatprep.subr.mxu0 0.0
    %1380 = vmatpush1.msra.mxu0 %v1167
    %1381 = vmatprep.subr.mxu0 0.0
    %1382 = vmatpush1.msra.mxu0 %v1168
    %1383 = vmatprep.subr.mxu0 0.0
    %1384 = vmatpush1.msra.mxu0 %v1169
    %1385 = vmatprep.subr.mxu0 0.0
    %1386 = vmatpush1.msra.mxu0 0.0
    %1387 = vmatprep.subr.mxu0 0.0
    %1388 = vmatpush1.msra.mxu0 0.0
    %1389 = vmatprep.subr.mxu0 0.0
    %1390 = vmatpush1.msra.mxu0 0.0
    %1391 = vmatprep.subr.mxu0 0.0
    %1392 = vmatpush1.msra.mxu0 0.0
    %1393 = vmatprep.subr.mxu0 0.0
    %1394 = vmatpush1.msra.mxu0 0.0
    %1395 = vmatprep.subr.mxu0 0.0
    %1396 = vmatpush1.msra.mxu0 0.0
    %1397 = vmatprep.subr.mxu0 0.0
    %1398 = vmatpush1.msra.mxu0 0.0
    %1399 = vmatprep.subr.mxu0 0.0
    %1400 = vmatpush1.msra.mxu0 0.0
    %1401 = vmatprep.subr.mxu0 0.0
    %1402 = vmatpush1.msra.mxu0 0.0
    %1403 = vmatprep.subr.mxu0 0.0
    %1404 = vmatpush1.msra.mxu0 0.0
    %1405 = vmatprep.subr.mxu0 0.0
    %1406 = vmatpush1.msra.mxu0 0.0
    %1407 = vmatprep.subr.mxu0 0.0
    %1408 = vmatpush1.msra.mxu0 0.0
    %1409 = vmatprep.subr.mxu0 0.0
    %1410 = vmatpush1.msra.mxu0 0.0
    %1411 = vmatprep.subr.mxu0 0.0
    %1412 = vmatpush1.msra.mxu0 0.0
    %1413 = vmatprep.subr.mxu0 0.0
    %1414 = vmatpush1.msra.mxu0 0.0
    %1415 = vmatprep.subr.mxu0 0.0
    %1416 = vmatpush1.msra.mxu0 0.0
    %1417 = vmatprep.subr.mxu0 0.0
    %1418 = vmatpush1.msra.mxu0 0.0
    %1419 = vmatprep.subr.mxu0 0.0
    %1420 = vmatpush1.msra.mxu0 0.0
    %1421 = vmatprep.subr.mxu0 0.0
    %1422 = vmatpush1.msra.mxu0 0.0
    %1423 = vmatprep.subr.mxu0 0.0
    %1424 = vmatpush1.msra.mxu0 0.0
    %1425 = vmatprep.subr.mxu0 0.0
    %1426 = vmatpush1.msra.mxu0 0.0
    %1427 = vmatprep.subr.mxu0 0.0
    %1428 = vmatpush1.msra.mxu0 0.0
    %1429 = vmatprep.subr.mxu0 0.0
    %1430 = vmatpush1.msra.mxu0 0.0
    %1431 = vmatprep.subr.mxu0 0.0
    %1432 = vmatpush1.msra.mxu0 0.0
    %1433 = vmatprep.subr.mxu0 0.0
    %1434 = vmatpush1.msra.mxu0 0.0
    %1435 = vmatprep.subr.mxu0 0.0
    %1436 = vmatpush1.msra.mxu0 0.0
    %1437 = vmatprep.subr.mxu0 0.0
    %1438 = vmatpush1.msra.mxu0 0.0
    %1439 = vmatprep.subr.mxu0 0.0
    %1440 = vmatpush1.msra.mxu0 0.0
    %1441 = vmatprep.mubr.f32.mxu0 0.0
    %1442 = vmatmul.mubr.f32.gmra.mrb[0].mxu0 %v1375
    %v1443 = vpop.f32.mrb[0].mxu0
    %v1444 = vadd.f32 0.0, %v1443
    %v1445 = vpop.f32.mrb[0].mxu0
    %1446 = vdwg.mxu0
    %v1448 = vrot.slane %v1444, 6
    %v1450 = vadd.f32 %v1163, %v1448
    %v1451 = vxor.u32 %v1450, 2147483648
    %v1452 = vmul.f32 %v1451, 1.442695
    %v1453 = vpow.pop %v1452
    %v1454 = vadd.f32 %v1453, 1.0
    %v1455 = vrcp.pop %v1454
    %v1456 = vmul.f32 1.0, %v1455
    %v1457 = vtanh.pop %v1450
    %v1459 = vrot.slane %v1364, 7
    %v1461 = vmul.f32 %v1456, %v1459
    %1463 = vrot.lane.b32.xlu0 %v1457, 64
    %v1464 = vpop.permute.xlu0 %1463
    %v1466 = vmul.f32 %v1456, %v1464
    %1468 = vrot.lane.b32.xlu0 %v1466, 32
    %v1469 = vpop.permute.xlu0 %1468
    %v1471 = vadd.f32 %v1461, %v1469
    %v1472 = vtanh.pop %v1471
    %1474 = vrot.lane.b32.xlu0 %v1472, 64
    %v1475 = vpop.permute.xlu0 %1474
    %v1477 = vmul.f32 %v1456, %v1475
    %v1479 = vrot.slane %v1477, 2
    %1480 = vrot.lane.b32.xlu0 %v1479, 32
    %v1481 = vpop.permute.xlu0 %1480
    %v1482 = vsel %vm219, %v1481, 0
    %1484 = vmatprep.subr.mxu0 0.0
    %1485 = vmatpush1.msra.mxu0 %v1166
    %1486 = vmatprep.subr.mxu0 0.0
    %1487 = vmatpush1.msra.mxu0 %v1167
    %1488 = vmatprep.subr.mxu0 0.0
    %1489 = vmatpush1.msra.mxu0 %v1168
    %1490 = vmatprep.subr.mxu0 0.0
    %1491 = vmatpush1.msra.mxu0 %v1169
    %1492 = vmatprep.subr.mxu0 0.0
    %1493 = vmatpush1.msra.mxu0 0.0
    %1494 = vmatprep.subr.mxu0 0.0
    %1495 = vmatpush1.msra.mxu0 0.0
    %1496 = vmatprep.subr.mxu0 0.0
    %1497 = vmatpush1.msra.mxu0 0.0
    %1498 = vmatprep.subr.mxu0 0.0
    %1499 = vmatpush1.msra.mxu0 0.0
    %1500 = vmatprep.subr.mxu0 0.0
    %1501 = vmatpush1.msra.mxu0 0.0
    %1502 = vmatprep.subr.mxu0 0.0
    %1503 = vmatpush1.msra.mxu0 0.0
    %1504 = vmatprep.subr.mxu0 0.0
    %1505 = vmatpush1.msra.mxu0 0.0
    %1506 = vmatprep.subr.mxu0 0.0
    %1507 = vmatpush1.msra.mxu0 0.0
    %1508 = vmatprep.subr.mxu0 0.0
    %1509 = vmatpush1.msra.mxu0 0.0
    %1510 = vmatprep.subr.mxu0 0.0
    %1511 = vmatpush1.msra.mxu0 0.0
    %1512 = vmatprep.subr.mxu0 0.0
    %1513 = vmatpush1.msra.mxu0 0.0
    %1514 = vmatprep.subr.mxu0 0.0
    %1515 = vmatpush1.msra.mxu0 0.0
    %1516 = vmatprep.subr.mxu0 0.0
    %1517 = vmatpush1.msra.mxu0 0.0
    %1518 = vmatprep.subr.mxu0 0.0
    %1519 = vmatpush1.msra.mxu0 0.0
    %1520 = vmatprep.subr.mxu0 0.0
    %1521 = vmatpush1.msra.mxu0 0.0
    %1522 = vmatprep.subr.mxu0 0.0
    %1523 = vmatpush1.msra.mxu0 0.0
    %1524 = vmatprep.subr.mxu0 0.0
    %1525 = vmatpush1.msra.mxu0 0.0
    %1526 = vmatprep.subr.mxu0 0.0
    %1527 = vmatpush1.msra.mxu0 0.0
    %1528 = vmatprep.subr.mxu0 0.0
    %1529 = vmatpush1.msra.mxu0 0.0
    %1530 = vmatprep.subr.mxu0 0.0
    %1531 = vmatpush1.msra.mxu0 0.0
    %1532 = vmatprep.subr.mxu0 0.0
    %1533 = vmatpush1.msra.mxu0 0.0
    %1534 = vmatprep.subr.mxu0 0.0
    %1535 = vmatpush1.msra.mxu0 0.0
    %1536 = vmatprep.subr.mxu0 0.0
    %1537 = vmatpush1.msra.mxu0 0.0
    %1538 = vmatprep.subr.mxu0 0.0
    %1539 = vmatpush1.msra.mxu0 0.0
    %1540 = vmatprep.subr.mxu0 0.0
    %1541 = vmatpush1.msra.mxu0 0.0
    %1542 = vmatprep.subr.mxu0 0.0
    %1543 = vmatpush1.msra.mxu0 0.0
    %1544 = vmatprep.subr.mxu0 0.0
    %1545 = vmatpush1.msra.mxu0 0.0
    %1546 = vmatprep.subr.mxu0 0.0
    %1547 = vmatpush1.msra.mxu0 0.0
    %1548 = vmatprep.mubr.f32.mxu0 0.0
    %1549 = vmatmul.mubr.f32.gmra.mrb[0].mxu0 %v1482
    %v1550 = vpop.f32.mrb[0].mxu0
    %v1551 = vadd.f32 0.0, %v1550
    %v1552 = vpop.f32.mrb[0].mxu0
    %1553 = vdwg.mxu0
    %v1555 = vrot.slane %v1551, 5
    %v1557 = vadd.f32 %v1163, %v1555
    %v1558 = vxor.u32 %v1557, 2147483648
    %v1559 = vmul.f32 %v1558, 1.442695
    %v1560 = vpow.pop %v1559
    %v1561 = vadd.f32 %v1560, 1.0
    %v1562 = vrcp.pop %v1561
    %v1563 = vmul.f32 1.0, %v1562
    %v1564 = vtanh.pop %v1557
    %v1566 = vrot.slane %v1471, 7
    %v1568 = vmul.f32 %v1563, %v1566
    %1570 = vrot.lane.b32.xlu0 %v1564, 64
    %v1571 = vpop.permute.xlu0 %1570
    %v1573 = vmul.f32 %v1563, %v1571
    %1575 = vrot.lane.b32.xlu0 %v1573, 32
    %v1576 = vpop.permute.xlu0 %1575
    %v1578 = vadd.f32 %v1568, %v1576
    %v1579 = vtanh.pop %v1578
    %1581 = vrot.lane.b32.xlu0 %v1579, 64
    %v1582 = vpop.permute.xlu0 %1581
    %v1584 = vmul.f32 %v1563, %v1582
    %v1586 = vrot.slane %v1584, 3
    %1587 = vrot.lane.b32.xlu0 %v1586, 32
    %v1588 = vpop.permute.xlu0 %1587
    %v1589 = vsel %vm219, %v1588, 0
    %1591 = vmatprep.subr.mxu0 0.0
    %1592 = vmatpush1.msra.mxu0 %v1166
    %1593 = vmatprep.subr.mxu0 0.0
    %1594 = vmatpush1.msra.mxu0 %v1167
    %1595 = vmatprep.subr.mxu0 0.0
    %1596 = vmatpush1.msra.mxu0 %v1168
    %1597 = vmatprep.subr.mxu0 0.0
    %1598 = vmatpush1.msra.mxu0 %v1169
    %1599 = vmatprep.subr.mxu0 0.0
    %1600 = vmatpush1.msra.mxu0 0.0
    %1601 = vmatprep.subr.mxu0 0.0
    %1602 = vmatpush1.msra.mxu0 0.0
    %1603 = vmatprep.subr.mxu0 0.0
    %1604 = vmatpush1.msra.mxu0 0.0
    %1605 = vmatprep.subr.mxu0 0.0
    %1606 = vmatpush1.msra.mxu0 0.0
    %1607 = vmatprep.subr.mxu0 0.0
    %1608 = vmatpush1.msra.mxu0 0.0
    %1609 = vmatprep.subr.mxu0 0.0
    %1610 = vmatpush1.msra.mxu0 0.0
    %1611 = vmatprep.subr.mxu0 0.0
    %1612 = vmatpush1.msra.mxu0 0.0
    %1613 = vmatprep.subr.mxu0 0.0
    %1614 = vmatpush1.msra.mxu0 0.0
    %1615 = vmatprep.subr.mxu0 0.0
    %1616 = vmatpush1.msra.mxu0 0.0
    %1617 = vmatprep.subr.mxu0 0.0
    %1618 = vmatpush1.msra.mxu0 0.0
    %1619 = vmatprep.subr.mxu0 0.0
    %1620 = vmatpush1.msra.mxu0 0.0
    %1621 = vmatprep.subr.mxu0 0.0
    %1622 = vmatpush1.msra.mxu0 0.0
    %1623 = vmatprep.subr.mxu0 0.0
    %1624 = vmatpush1.msra.mxu0 0.0
    %1625 = vmatprep.subr.mxu0 0.0
    %1626 = vmatpush1.msra.mxu0 0.0
    %1627 = vmatprep.subr.mxu0 0.0
    %1628 = vmatpush1.msra.mxu0 0.0
    %1629 = vmatprep.subr.mxu0 0.0
    %1630 = vmatpush1.msra.mxu0 0.0
    %1631 = vmatprep.subr.mxu0 0.0
    %1632 = vmatpush1.msra.mxu0 0.0
    %1633 = vmatprep.subr.mxu0 0.0
    %1634 = vmatpush1.msra.mxu0 0.0
    %1635 = vmatprep.subr.mxu0 0.0
    %1636 = vmatpush1.msra.mxu0 0.0
    %1637 = vmatprep.subr.mxu0 0.0
    %1638 = vmatpush1.msra.mxu0 0.0
    %1639 = vmatprep.subr.mxu0 0.0
    %1640 = vmatpush1.msra.mxu0 0.0
    %1641 = vmatprep.subr.mxu0 0.0
    %1642 = vmatpush1.msra.mxu0 0.0
    %1643 = vmatprep.subr.mxu0 0.0
    %1644 = vmatpush1.msra.mxu0 0.0
    %1645 = vmatprep.subr.mxu0 0.0
    %1646 = vmatpush1.msra.mxu0 0.0
    %1647 = vmatprep.subr.mxu0 0.0
    %1648 = vmatpush1.msra.mxu0 0.0
    %1649 = vmatprep.subr.mxu0 0.0
    %1650 = vmatpush1.msra.mxu0 0.0
    %1651 = vmatprep.subr.mxu0 0.0
    %1652 = vmatpush1.msra.mxu0 0.0
    %1653 = vmatprep.subr.mxu0 0.0
    %1654 = vmatpush1.msra.mxu0 0.0
    %1655 = vmatprep.mubr.f32.mxu0 0.0
    %1656 = vmatmul.mubr.f32.gmra.mrb[0].mxu0 %v1589
    %v1657 = vpop.f32.mrb[0].mxu0
    %v1658 = vadd.f32 0.0, %v1657
    %v1659 = vpop.f32.mrb[0].mxu0
    %1660 = vdwg.mxu0
    %v1662 = vrot.slane %v1658, 4
    %v1664 = vadd.f32 %v1163, %v1662
    %v1665 = vxor.u32 %v1664, 2147483648
    %v1666 = vmul.f32 %v1665, 1.442695
    %v1667 = vpow.pop %v1666
    %v1668 = vadd.f32 %v1667, 1.0
    %v1669 = vrcp.pop %v1668
    %v1670 = vmul.f32 1.0, %v1669
    %v1671 = vtanh.pop %v1664
    %v1673 = vrot.slane %v1578, 7
    %v1675 = vmul.f32 %v1670, %v1673
    %1677 = vrot.lane.b32.xlu0 %v1671, 64
    %v1678 = vpop.permute.xlu0 %1677
    %v1680 = vmul.f32 %v1670, %v1678
    %1682 = vrot.lane.b32.xlu0 %v1680, 32
    %v1683 = vpop.permute.xlu0 %1682
    %v1685 = vadd.f32 %v1675, %v1683
    %v1686 = vtanh.pop %v1685
    %1688 = vrot.lane.b32.xlu0 %v1686, 64
    %v1689 = vpop.permute.xlu0 %1688
    %v1691 = vmul.f32 %v1670, %v1689
    %v1693 = vrot.slane %v1691, 4
    %1694 = vrot.lane.b32.xlu0 %v1693, 32
    %v1695 = vpop.permute.xlu0 %1694
    %v1696 = vsel %vm219, %v1695, 0
    %1698 = vmatprep.subr.mxu0 0.0
    %1699 = vmatpush1.msra.mxu0 %v1166
    %1700 = vmatprep.subr.mxu0 0.0
    %1701 = vmatpush1.msra.mxu0 %v1167
    %1702 = vmatprep.subr.mxu0 0.0
    %1703 = vmatpush1.msra.mxu0 %v1168
    %1704 = vmatprep.subr.mxu0 0.0
    %1705 = vmatpush1.msra.mxu0 %v1169
    %1706 = vmatprep.subr.mxu0 0.0
    %1707 = vmatpush1.msra.mxu0 0.0
    %1708 = vmatprep.subr.mxu0 0.0
    %1709 = vmatpush1.msra.mxu0 0.0
    %1710 = vmatprep.subr.mxu0 0.0
    %1711 = vmatpush1.msra.mxu0 0.0
    %1712 = vmatprep.subr.mxu0 0.0
    %1713 = vmatpush1.msra.mxu0 0.0
    %1714 = vmatprep.subr.mxu0 0.0
    %1715 = vmatpush1.msra.mxu0 0.0
    %1716 = vmatprep.subr.mxu0 0.0
    %1717 = vmatpush1.msra.mxu0 0.0
    %1718 = vmatprep.subr.mxu0 0.0
    %1719 = vmatpush1.msra.mxu0 0.0
    %1720 = vmatprep.subr.mxu0 0.0
    %1721 = vmatpush1.msra.mxu0 0.0
    %1722 = vmatprep.subr.mxu0 0.0
    %1723 = vmatpush1.msra.mxu0 0.0
    %1724 = vmatprep.subr.mxu0 0.0
    %1725 = vmatpush1.msra.mxu0 0.0
    %1726 = vmatprep.subr.mxu0 0.0
    %1727 = vmatpush1.msra.mxu0 0.0
    %1728 = vmatprep.subr.mxu0 0.0
    %1729 = vmatpush1.msra.mxu0 0.0
    %1730 = vmatprep.subr.mxu0 0.0
    %1731 = vmatpush1.msra.mxu0 0.0
    %1732 = vmatprep.subr.mxu0 0.0
    %1733 = vmatpush1.msra.mxu0 0.0
    %1734 = vmatprep.subr.mxu0 0.0
    %1735 = vmatpush1.msra.mxu0 0.0
    %1736 = vmatprep.subr.mxu0 0.0
    %1737 = vmatpush1.msra.mxu0 0.0
    %1738 = vmatprep.subr.mxu0 0.0
    %1739 = vmatpush1.msra.mxu0 0.0
    %1740 = vmatprep.subr.mxu0 0.0
    %1741 = vmatpush1.msra.mxu0 0.0
    %1742 = vmatprep.subr.mxu0 0.0
    %1743 = vmatpush1.msra.mxu0 0.0
    %1744 = vmatprep.subr.mxu0 0.0
    %1745 = vmatpush1.msra.mxu0 0.0
    %1746 = vmatprep.subr.mxu0 0.0
    %1747 = vmatpush1.msra.mxu0 0.0
    %1748 = vmatprep.subr.mxu0 0.0
    %1749 = vmatpush1.msra.mxu0 0.0
    %1750 = vmatprep.subr.mxu0 0.0
    %1751 = vmatpush1.msra.mxu0 0.0
    %1752 = vmatprep.subr.mxu0 0.0
    %1753 = vmatpush1.msra.mxu0 0.0
    %1754 = vmatprep.subr.mxu0 0.0
    %1755 = vmatpush1.msra.mxu0 0.0
    %1756 = vmatprep.subr.mxu0 0.0
    %1757 = vmatpush1.msra.mxu0 0.0
    %1758 = vmatprep.subr.mxu0 0.0
    %1759 = vmatpush1.msra.mxu0 0.0
    %1760 = vmatprep.subr.mxu0 0.0
    %1761 = vmatpush1.msra.mxu0 0.0
    %1762 = vmatprep.mubr.f32.mxu0 0.0
    %1763 = vmatmul.mubr.f32.gmra.mrb[0].mxu0 %v1696
    %v1764 = vpop.f32.mrb[0].mxu0
    %v1765 = vadd.f32 0.0, %v1764
    %v1766 = vpop.f32.mrb[0].mxu0
    %1767 = vdwg.mxu0
    %v1769 = vrot.slane %v1765, 3
    %v1771 = vadd.f32 %v1163, %v1769
    %v1772 = vxor.u32 %v1771, 2147483648
    %v1773 = vmul.f32 %v1772, 1.442695
    %v1774 = vpow.pop %v1773
    %v1775 = vadd.f32 %v1774, 1.0
    %v1776 = vrcp.pop %v1775
    %v1777 = vmul.f32 1.0, %v1776
    %v1778 = vtanh.pop %v1771
    %v1780 = vrot.slane %v1685, 7
    %v1782 = vmul.f32 %v1777, %v1780
    %1784 = vrot.lane.b32.xlu0 %v1778, 64
    %v1785 = vpop.permute.xlu0 %1784
    %v1787 = vmul.f32 %v1777, %v1785
    %1789 = vrot.lane.b32.xlu0 %v1787, 32
    %v1790 = vpop.permute.xlu0 %1789
    %v1792 = vadd.f32 %v1782, %v1790
    %v1793 = vtanh.pop %v1792
    %1795 = vrot.lane.b32.xlu0 %v1793, 64
    %v1796 = vpop.permute.xlu0 %1795
    %v1798 = vmul.f32 %v1777, %v1796
    %v1800 = vrot.slane %v1798, 5
    %1801 = vrot.lane.b32.xlu0 %v1800, 32
    %v1802 = vpop.permute.xlu0 %1801
    %v1803 = vsel %vm219, %v1802, 0
    %1805 = vmatprep.subr.mxu0 0.0
    %1806 = vmatpush1.msra.mxu0 %v1166
    %1807 = vmatprep.subr.mxu0 0.0
    %1808 = vmatpush1.msra.mxu0 %v1167
    %1809 = vmatprep.subr.mxu0 0.0
    %1810 = vmatpush1.msra.mxu0 %v1168
    %1811 = vmatprep.subr.mxu0 0.0
    %1812 = vmatpush1.msra.mxu0 %v1169
    %1813 = vmatprep.subr.mxu0 0.0
    %1814 = vmatpush1.msra.mxu0 0.0
    %1815 = vmatprep.subr.mxu0 0.0
    %1816 = vmatpush1.msra.mxu0 0.0
    %1817 = vmatprep.subr.mxu0 0.0
    %1818 = vmatpush1.msra.mxu0 0.0
    %1819 = vmatprep.subr.mxu0 0.0
    %1820 = vmatpush1.msra.mxu0 0.0
    %1821 = vmatprep.subr.mxu0 0.0
    %1822 = vmatpush1.msra.mxu0 0.0
    %1823 = vmatprep.subr.mxu0 0.0
    %1824 = vmatpush1.msra.mxu0 0.0
    %1825 = vmatprep.subr.mxu0 0.0
    %1826 = vmatpush1.msra.mxu0 0.0
    %1827 = vmatprep.subr.mxu0 0.0
    %1828 = vmatpush1.msra.mxu0 0.0
    %1829 = vmatprep.subr.mxu0 0.0
    %1830 = vmatpush1.msra.mxu0 0.0
    %1831 = vmatprep.subr.mxu0 0.0
    %1832 = vmatpush1.msra.mxu0 0.0
    %1833 = vmatprep.subr.mxu0 0.0
    %1834 = vmatpush1.msra.mxu0 0.0
    %1835 = vmatprep.subr.mxu0 0.0
    %1836 = vmatpush1.msra.mxu0 0.0
    %1837 = vmatprep.subr.mxu0 0.0
    %1838 = vmatpush1.msra.mxu0 0.0
    %1839 = vmatprep.subr.mxu0 0.0
    %1840 = vmatpush1.msra.mxu0 0.0
    %1841 = vmatprep.subr.mxu0 0.0
    %1842 = vmatpush1.msra.mxu0 0.0
    %1843 = vmatprep.subr.mxu0 0.0
    %1844 = vmatpush1.msra.mxu0 0.0
    %1845 = vmatprep.subr.mxu0 0.0
    %1846 = vmatpush1.msra.mxu0 0.0
    %1847 = vmatprep.subr.mxu0 0.0
    %1848 = vmatpush1.msra.mxu0 0.0
    %1849 = vmatprep.subr.mxu0 0.0
    %1850 = vmatpush1.msra.mxu0 0.0
    %1851 = vmatprep.subr.mxu0 0.0
    %1852 = vmatpush1.msra.mxu0 0.0
    %1853 = vmatprep.subr.mxu0 0.0
    %1854 = vmatpush1.msra.mxu0 0.0
    %1855 = vmatprep.subr.mxu0 0.0
    %1856 = vmatpush1.msra.mxu0 0.0
    %1857 = vmatprep.subr.mxu0 0.0
    %1858 = vmatpush1.msra.mxu0 0.0
    %1859 = vmatprep.subr.mxu0 0.0
    %1860 = vmatpush1.msra.mxu0 0.0
    %1861 = vmatprep.subr.mxu0 0.0
    %1862 = vmatpush1.msra.mxu0 0.0
    %1863 = vmatprep.subr.mxu0 0.0
    %1864 = vmatpush1.msra.mxu0 0.0
    %1865 = vmatprep.subr.mxu0 0.0
    %1866 = vmatpush1.msra.mxu0 0.0
    %1867 = vmatprep.subr.mxu0 0.0
    %1868 = vmatpush1.msra.mxu0 0.0
    %1869 = vmatprep.mubr.f32.mxu0 0.0
    %1870 = vmatmul.mubr.f32.gmra.mrb[0].mxu0 %v1803
    %v1871 = vpop.f32.mrb[0].mxu0
    %v1872 = vadd.f32 0.0, %v1871
    %v1873 = vpop.f32.mrb[0].mxu0
    %1874 = vdwg.mxu0
    %v1876 = vrot.slane %v1872, 2
    %v1878 = vadd.f32 %v1163, %v1876
    %v1879 = vxor.u32 %v1878, 2147483648
    %v1880 = vmul.f32 %v1879, 1.442695
    %v1881 = vpow.pop %v1880
    %v1882 = vadd.f32 %v1881, 1.0
    %v1883 = vrcp.pop %v1882
    %v1884 = vmul.f32 1.0, %v1883
    %v1885 = vtanh.pop %v1878
    %v1887 = vrot.slane %v1792, 7
    %v1889 = vmul.f32 %v1884, %v1887
    %1891 = vrot.lane.b32.xlu0 %v1885, 64
    %v1892 = vpop.permute.xlu0 %1891
    %v1894 = vmul.f32 %v1884, %v1892
    %1896 = vrot.lane.b32.xlu0 %v1894, 32
    %v1897 = vpop.permute.xlu0 %1896
    %v1899 = vadd.f32 %v1889, %v1897
    %v1900 = vtanh.pop %v1899
    %1902 = vrot.lane.b32.xlu0 %v1900, 64
    %v1903 = vpop.permute.xlu0 %1902
    %v1905 = vmul.f32 %v1884, %v1903
    %v1907 = vrot.slane %v1905, 6
    %1908 = vrot.lane.b32.xlu0 %v1907, 32
    %v1909 = vpop.permute.xlu0 %1908
    %v1910 = vsel %vm219, %v1909, 0
    %1912 = vmatprep.subr.mxu0 0.0
    %1913 = vmatpush1.msra.mxu0 %v1166
    %1914 = vmatprep.subr.mxu0 0.0
    %1915 = vmatpush1.msra.mxu0 %v1167
    %1916 = vmatprep.subr.mxu0 0.0
    %1917 = vmatpush1.msra.mxu0 %v1168
    %1918 = vmatprep.subr.mxu0 0.0
    %1919 = vmatpush1.msra.mxu0 %v1169
    %1920 = vmatprep.subr.mxu0 0.0
    %1921 = vmatpush1.msra.mxu0 0.0
    %1922 = vmatprep.subr.mxu0 0.0
    %1923 = vmatpush1.msra.mxu0 0.0
    %1924 = vmatprep.subr.mxu0 0.0
    %1925 = vmatpush1.msra.mxu0 0.0
    %1926 = vmatprep.subr.mxu0 0.0
    %1927 = vmatpush1.msra.mxu0 0.0
    %1928 = vmatprep.subr.mxu0 0.0
    %1929 = vmatpush1.msra.mxu0 0.0
    %1930 = vmatprep.subr.mxu0 0.0
    %1931 = vmatpush1.msra.mxu0 0.0
    %1932 = vmatprep.subr.mxu0 0.0
    %1933 = vmatpush1.msra.mxu0 0.0
    %1934 = vmatprep.subr.mxu0 0.0
    %1935 = vmatpush1.msra.mxu0 0.0
    %1936 = vmatprep.subr.mxu0 0.0
    %1937 = vmatpush1.msra.mxu0 0.0
    %1938 = vmatprep.subr.mxu0 0.0
    %1939 = vmatpush1.msra.mxu0 0.0
    %1940 = vmatprep.subr.mxu0 0.0
    %1941 = vmatpush1.msra.mxu0 0.0
    %1942 = vmatprep.subr.mxu0 0.0
    %1943 = vmatpush1.msra.mxu0 0.0
    %1944 = vmatprep.subr.mxu0 0.0
    %1945 = vmatpush1.msra.mxu0 0.0
    %1946 = vmatprep.subr.mxu0 0.0
    %1947 = vmatpush1.msra.mxu0 0.0
    %1948 = vmatprep.subr.mxu0 0.0
    %1949 = vmatpush1.msra.mxu0 0.0
    %1950 = vmatprep.subr.mxu0 0.0
    %1951 = vmatpush1.msra.mxu0 0.0
    %1952 = vmatprep.subr.mxu0 0.0
    %1953 = vmatpush1.msra.mxu0 0.0
    %1954 = vmatprep.subr.mxu0 0.0
    %1955 = vmatpush1.msra.mxu0 0.0
    %1956 = vmatprep.subr.mxu0 0.0
    %1957 = vmatpush1.msra.mxu0 0.0
    %1958 = vmatprep.subr.mxu0 0.0
    %1959 = vmatpush1.msra.mxu0 0.0
    %1960 = vmatprep.subr.mxu0 0.0
    %1961 = vmatpush1.msra.mxu0 0.0
    %1962 = vmatprep.subr.mxu0 0.0
    %1963 = vmatpush1.msra.mxu0 0.0
    %1964 = vmatprep.subr.mxu0 0.0
    %1965 = vmatpush1.msra.mxu0 0.0
    %1966 = vmatprep.subr.mxu0 0.0
    %1967 = vmatpush1.msra.mxu0 0.0
    %1968 = vmatprep.subr.mxu0 0.0
    %1969 = vmatpush1.msra.mxu0 0.0
    %1970 = vmatprep.subr.mxu0 0.0
    %1971 = vmatpush1.msra.mxu0 0.0
    %1972 = vmatprep.subr.mxu0 0.0
    %1973 = vmatpush1.msra.mxu0 0.0
    %1974 = vmatprep.subr.mxu0 0.0
    %1975 = vmatpush1.msra.mxu0 0.0
    %1976 = vmatprep.mubr.f32.mxu0 0.0
    %1977 = vmatmul.mubr.f32.gmra.mrb[0].mxu0 %v1910
    %v1978 = vpop.f32.mrb[0].mxu0
    %v1979 = vadd.f32 0.0, %v1978
    %v1980 = vpop.f32.mrb[0].mxu0
    %1981 = vdwg.mxu0
    %v1983 = vrot.slane %v1979, 1
    %v1985 = vadd.f32 %v1163, %v1983
    %v1986 = vxor.u32 %v1985, 2147483648
    %v1987 = vmul.f32 %v1986, 1.442695
    %v1988 = vpow.pop %v1987
    %v1989 = vadd.f32 %v1988, 1.0
    %v1990 = vrcp.pop %v1989
    %v1991 = vmul.f32 1.0, %v1990
    %v1992 = vtanh.pop %v1985
    %v1994 = vrot.slane %v1899, 7
    %v1996 = vmul.f32 %v1991, %v1994
    %1998 = vrot.lane.b32.xlu0 %v1992, 64
    %v1999 = vpop.permute.xlu0 %1998
    %v2001 = vmul.f32 %v1991, %v1999
    %2003 = vrot.lane.b32.xlu0 %v2001, 32
    %v2004 = vpop.permute.xlu0 %2003
    %v2006 = vadd.f32 %v1996, %v2004
    %v2007 = vtanh.pop %v2006
    %2009 = vrot.lane.b32.xlu0 %v2007, 64
    %v2010 = vpop.permute.xlu0 %2009
    %v2012 = vmul.f32 %v1991, %v2010
    %v2013 = vsel %vm1066, %v1264, %v1370
    %v2014 = vsel %vm1068, %v2013, %v1477
    %v2015 = vsel %vm1070, %v2014, %v1584
    %v2016 = vsel %vm1072, %v2015, %v1691
    %v2017 = vsel %vm1074, %v2016, %v1798
    %v2018 = vsel %vm1076, %v2017, %v1905
    %v2019 = vsel %vm1078, %v2018, %v2012
    %v2020 = vld [vmem:[#allocation10] sm:$0xff]
    %v2021 = vld [vmem:[#allocation10 + $0x8] sm:$0xff]
    %v2022 = vld [vmem:[#allocation10 + $0x10] sm:$0xff]
    %v2023 = vld [vmem:[#allocation10 + $0x18] sm:$0xff]
    %v2024 = vld [vmem:[%s8] sm:$0x1]
    %v2026 = vlaneseq
    %v2027 = vshrl.u32 %v2026, 7
    %v2028 = vsub.s32 0, %v2027
    %v2029 = vrot.slane %v2024, %v2028
    %2032 = vrot.lane.b32.xlu0 %v2019, 32
    %v2033 = vpop.permute.xlu0 %2032
    %v2034 = vsel %vm219, %v2033, 0
    %2036 = vmatprep.subr.mxu0 0.0
    %2037 = vmatpush1.msra.mxu0 %v2020
    %2038 = vmatprep.subr.mxu0 0.0
    %2039 = vmatpush1.msra.mxu0 %v2021
    %2040 = vmatprep.subr.mxu0 0.0
    %2041 = vmatpush1.msra.mxu0 %v2022
    %2042 = vmatprep.subr.mxu0 0.0
    %2043 = vmatpush1.msra.mxu0 %v2023
    %2044 = vmatprep.subr.mxu0 0.0
    %2045 = vmatpush1.msra.mxu0 0.0
    %2046 = vmatprep.subr.mxu0 0.0
    %2047 = vmatpush1.msra.mxu0 0.0
    %2048 = vmatprep.subr.mxu0 0.0
    %2049 = vmatpush1.msra.mxu0 0.0
    %2050 = vmatprep.subr.mxu0 0.0
    %2051 = vmatpush1.msra.mxu0 0.0
    %2052 = vmatprep.subr.mxu0 0.0
    %2053 = vmatpush1.msra.mxu0 0.0
    %2054 = vmatprep.subr.mxu0 0.0
    %2055 = vmatpush1.msra.mxu0 0.0
    %2056 = vmatprep.subr.mxu0 0.0
    %2057 = vmatpush1.msra.mxu0 0.0
    %2058 = vmatprep.subr.mxu0 0.0
    %2059 = vmatpush1.msra.mxu0 0.0
    %2060 = vmatprep.subr.mxu0 0.0
    %2061 = vmatpush1.msra.mxu0 0.0
    %2062 = vmatprep.subr.mxu0 0.0
    %2063 = vmatpush1.msra.mxu0 0.0
    %2064 = vmatprep.subr.mxu0 0.0
    %2065 = vmatpush1.msra.mxu0 0.0
    %2066 = vmatprep.subr.mxu0 0.0
    %2067 = vmatpush1.msra.mxu0 0.0
    %2068 = vmatprep.subr.mxu0 0.0
    %2069 = vmatpush1.msra.mxu0 0.0
    %2070 = vmatprep.subr.mxu0 0.0
    %2071 = vmatpush1.msra.mxu0 0.0
    %2072 = vmatprep.subr.mxu0 0.0
    %2073 = vmatpush1.msra.mxu0 0.0
    %2074 = vmatprep.subr.mxu0 0.0
    %2075 = vmatpush1.msra.mxu0 0.0
    %2076 = vmatprep.subr.mxu0 0.0
    %2077 = vmatpush1.msra.mxu0 0.0
    %2078 = vmatprep.subr.mxu0 0.0
    %2079 = vmatpush1.msra.mxu0 0.0
    %2080 = vmatprep.subr.mxu0 0.0
    %2081 = vmatpush1.msra.mxu0 0.0
    %2082 = vmatprep.subr.mxu0 0.0
    %2083 = vmatpush1.msra.mxu0 0.0
    %2084 = vmatprep.subr.mxu0 0.0
    %2085 = vmatpush1.msra.mxu0 0.0
    %2086 = vmatprep.subr.mxu0 0.0
    %2087 = vmatpush1.msra.mxu0 0.0
    %2088 = vmatprep.subr.mxu0 0.0
    %2089 = vmatpush1.msra.mxu0 0.0
    %2090 = vmatprep.subr.mxu0 0.0
    %2091 = vmatpush1.msra.mxu0 0.0
    %2092 = vmatprep.subr.mxu0 0.0
    %2093 = vmatpush1.msra.mxu0 0.0
    %2094 = vmatprep.subr.mxu0 0.0
    %2095 = vmatpush1.msra.mxu0 0.0
    %2096 = vmatprep.subr.mxu0 0.0
    %2097 = vmatpush1.msra.mxu0 0.0
    %2098 = vmatprep.subr.mxu0 0.0
    %2099 = vmatpush1.msra.mxu0 0.0
    %2100 = vmatprep.mubr.f32.mxu0 0.0
    %2101 = vmatmul.mubr.f32.gmra.mrb[0].mxu0 %v2034
    %v2102 = vpop.f32.mrb[0].mxu0
    %v2103 = vadd.f32 %v2029, %v2102
    %v2104 = vpop.f32.mrb[0].mxu0
    %2105 = vdwg.mxu0
    %v2106 = vld [vmem:[#allocation12] sm:$0xff]
    %v2107 = vld [vmem:[#allocation12 + $0x8] sm:$0xff]
    %v2108 = vld [vmem:[#allocation12 + $0x10] sm:$0xff]
    %v2109 = vld [vmem:[#allocation12 + $0x18] sm:$0xff]
    %v2110 = vld [vmem:[#allocation12 + $0x20] sm:$0xff]
    %v2111 = vld [vmem:[#allocation12 + $0x28] sm:$0xff]
    %v2112 = vld [vmem:[#allocation12 + $0x30] sm:$0xff]
    %v2113 = vld [vmem:[#allocation12 + $0x38] sm:$0xff]
    %v2114 = vld [vmem:[#allocation12 + $0x40] sm:$0xff]
    %v2115 = vld [vmem:[#allocation12 + $0x48] sm:$0xff]
    %v2116 = vld [vmem:[#allocation12 + $0x50] sm:$0xff]
    %v2117 = vld [vmem:[#allocation12 + $0x58] sm:$0xff]
    %v2118 = vld [vmem:[#allocation12 + $0x60] sm:$0xff]
    %v2119 = vld [vmem:[#allocation12 + $0x68] sm:$0xff]
    %v2120 = vld [vmem:[#allocation12 + $0x70] sm:$0xff]
    %v2121 = vld [vmem:[#allocation12 + $0x78] sm:$0xff]
    %v2122 = vld [vmem:[%s10] sm:$0x1]
    %v2124 = vlaneseq
    %v2125 = vshrl.u32 %v2124, 7
    %v2126 = vsub.s32 0, %v2125
    %v2127 = vrot.slane %v2122, %v2126
    %2129 = vmatprep.subr.mxu0 0.0
    %2130 = vmatpush1.msra.mxu0 %v2106
    %2131 = vmatprep.subr.mxu0 0.0
    %2132 = vmatpush1.msra.mxu0 %v2107
    %2133 = vmatprep.subr.mxu0 0.0
    %2134 = vmatpush1.msra.mxu0 %v2108
    %2135 = vmatprep.subr.mxu0 0.0
    %2136 = vmatpush1.msra.mxu0 %v2109
    %2137 = vmatprep.subr.mxu0 0.0
    %2138 = vmatpush1.msra.mxu0 %v2110
    %2139 = vmatprep.subr.mxu0 0.0
    %2140 = vmatpush1.msra.mxu0 %v2111
    %2141 = vmatprep.subr.mxu0 0.0
    %2142 = vmatpush1.msra.mxu0 %v2112
    %2143 = vmatprep.subr.mxu0 0.0
    %2144 = vmatpush1.msra.mxu0 %v2113
    %2145 = vmatprep.subr.mxu0 0.0
    %2146 = vmatpush1.msra.mxu0 %v2114
    %2147 = vmatprep.subr.mxu0 0.0
    %2148 = vmatpush1.msra.mxu0 %v2115
    %2149 = vmatprep.subr.mxu0 0.0
    %2150 = vmatpush1.msra.mxu0 %v2116
    %2151 = vmatprep.subr.mxu0 0.0
    %2152 = vmatpush1.msra.mxu0 %v2117
    %2153 = vmatprep.subr.mxu0 0.0
    %2154 = vmatpush1.msra.mxu0 %v2118
    %2155 = vmatprep.subr.mxu0 0.0
    %2156 = vmatpush1.msra.mxu0 %v2119
    %2157 = vmatprep.subr.mxu0 0.0
    %2158 = vmatpush1.msra.mxu0 %v2120
    %2159 = vmatprep.subr.mxu0 0.0
    %2160 = vmatpush1.msra.mxu0 %v2121
    %2161 = vmatprep.subr.mxu0 0.0
    %2162 = vmatpush1.msra.mxu0 0.0
    %2163 = vmatprep.subr.mxu0 0.0
    %2164 = vmatpush1.msra.mxu0 0.0
    %2165 = vmatprep.subr.mxu0 0.0
    %2166 = vmatpush1.msra.mxu0 0.0
    %2167 = vmatprep.subr.mxu0 0.0
    %2168 = vmatpush1.msra.mxu0 0.0
    %2169 = vmatprep.subr.mxu0 0.0
    %2170 = vmatpush1.msra.mxu0 0.0
    %2171 = vmatprep.subr.mxu0 0.0
    %2172 = vmatpush1.msra.mxu0 0.0
    %2173 = vmatprep.subr.mxu0 0.0
    %2174 = vmatpush1.msra.mxu0 0.0
    %2175 = vmatprep.subr.mxu0 0.0
    %2176 = vmatpush1.msra.mxu0 0.0
    %2177 = vmatprep.subr.mxu0 0.0
    %2178 = vmatpush1.msra.mxu0 0.0
    %2179 = vmatprep.subr.mxu0 0.0
    %2180 = vmatpush1.msra.mxu0 0.0
    %2181 = vmatprep.subr.mxu0 0.0
    %2182 = vmatpush1.msra.mxu0 0.0
    %2183 = vmatprep.subr.mxu0 0.0
    %2184 = vmatpush1.msra.mxu0 0.0
    %2185 = vmatprep.subr.mxu0 0.0
    %2186 = vmatpush1.msra.mxu0 0.0
    %2187 = vmatprep.subr.mxu0 0.0
    %2188 = vmatpush1.msra.mxu0 0.0
    %2189 = vmatprep.subr.mxu0 0.0
    %2190 = vmatpush1.msra.mxu0 0.0
    %2191 = vmatprep.subr.mxu0 0.0
    %2192 = vmatpush1.msra.mxu0 0.0
    %2193 = vmatprep.mubr.f32.mxu0 0.0
    %2194 = vmatmul.mubr.f32.gmra.mrb[0].mxu0 %v2103
    %v2195 = vpop.f32.mrb[0].mxu0
    %v2196 = vadd.f32 %v2127, %v2195
    %v2197 = vpop.f32.mrb[0].mxu0
    %2198 = vdwg.mxu0
    %2199 = vst [vmem:[%s11] sm:$0xff] %v2196
    // Predicated region
    $region74: #{lstm_model_forward.1} parent=1 // pred_check
      _
    $region75: #{lstm_model_forward.1} parent=1 // pred_check_branch
      %2201 = sbr.rel (0) target = $region77
    $region76: #{lstm_model_forward.1} parent=1 // pred_region
      _
    $region77: #{lstm_model_forward.1} parent=1 // pred_fallthru
      _
    // Predicated region
    $region78: #{lstm_model_forward.1} parent=1 // pred_check
      _
    $region79: #{lstm_model_forward.1} parent=1 // pred_check_branch
      %2203 = sbr.rel (0) target = $region81
    $region80: #{lstm_model_forward.1} parent=1 // pred_region
      _
    $region81: #{lstm_model_forward.1} parent=1 // pred_fallthru
      _
    %2204 = vsyncpa [#allocation3], 1
    %2205 = vsyncpa [#allocation5], 1
    %2206 = vsyncpa [#allocation8], 1
    %2207 = vsyncpa [#allocation11], 1

</llo_original>
